<compile_context>
chip_gen: v7x
topology: tpu7x:2x2x1
jax: 0.10.0
libtpu: 0.0.40
codegen_flags: <defaults>
</compile_context>

<pallas_src>
import functools
import math

import jax
import jax.numpy as jnp
from jax import lax
from jax.experimental import pallas as pl
from jax.experimental.pallas import tpu as pltpu


# ------------------------------ fused kernel -------------------------------

def _fused_forward_kernel(*refs, node_types, edge_types, dst_types, num_layers,
                          hidden, heads, author_type):
    f32, bf16 = jnp.float32, jnp.bfloat16
    NEG = jnp.float32(-1e30)

    # ---- unpack refs (order must match `inputs` built in model_forward) ----
    pos = 0

    def take(n):
        nonlocal pos
        out = refs[pos:pos + n]
        pos += n
        return out

    enc = {t: take(3) for t in node_types}                    # x, w_enc, b_enc
    layers = []
    for _ in range(num_layers):
        per_type = {t: take(5) for t in dst_types}            # wq, bq, wa, ba, beta
        per_edge = [[take(4) for _ in range(heads)]           # WkA, bkA, WvM, bvM
                    for _ in edge_types]
        layers.append((per_type, per_edge))
    bias_refs = [take(1)[0] for _ in edge_types]              # (Nd, Ns) bf16 additive
    valid_refs = {t: take(1)[0] for t in dst_types}           # (Nd, 1) f32
    w_dec_ref, b_dec_ref = take(2)
    in_nodes_ref = take(1)[0]                                 # (B,) int32 in SMEM
    out_ref, zall_ref, zin_ref = refs[pos], refs[pos + 1], refs[pos + 2]

    def mm(a_bf16, w_ref):                                    # bf16 x bf16 -> f32 acc
        return jnp.dot(a_bf16, w_ref[...], preferred_element_type=f32)

    # ---- encoder: per-node-type Linear + relu ----
    h = {}
    for t in node_types:
        x_ref, w_ref, b_ref = enc[t]
        h[t] = jnp.maximum(mm(x_ref[...], w_ref) + b_ref[...], 0.0)

    # adjacency bias: cast bf16 -> f32 once, reused by every layer
    mask_bias = [r[...].astype(f32) for r in bias_refs]

    # ---- HGT conv layers ----
    for per_type, per_edge in layers:
        hb = {t: h[t].astype(bf16) for t in node_types}       # one cast per layer

        # q projection: one full-width GEMM per destination type (both heads)
        qb = {}
        for t in dst_types:
            wq_ref, bq_ref = per_type[t][0], per_type[t][1]
            qb[t] = (mm(hb[t], wq_ref) + bq_ref[...]).astype(bf16)

        # per edge type / head: relation-folded k,v transforms + biased scores
        per_dst = {t: [] for t in dst_types}
        for e_idx, (src, _rel, dst) in enumerate(edge_types):
            bias = mask_bias[e_idx]                           # (Nd, Ns)
            head_data = []
            for hh in range(heads):
                wka_ref, bka_ref, wvm_ref, bvm_ref = per_edge[e_idx][hh]
                # zero outside head-hh columns, so full-width contractions stay
                # per-head correct with no lane slicing
                kA = (mm(hb[src], wka_ref) + bka_ref[...]).astype(bf16)   # (Ns, hidden)
                vM = (mm(hb[src], wvm_ref) + bvm_ref[...]).astype(bf16)   # (Ns, hidden)
                s = lax.dot_general(qb[dst], kA, (((1,), (1,)), ((), ())),
                                    preferred_element_type=f32) + bias    # (Nd, Ns)
                head_data.append((s, vM))
            per_dst[dst].append(head_data)

        # joint (online) softmax over all incoming edge types + aggregation + out
        new_h = dict(h)
        for t in dst_types:
            x = h[t]
            wa_ref, ba_ref, beta_ref = per_type[t][2], per_type[t][3], per_type[t][4]
            Nd = x.shape[0]
            agg = jnp.zeros((Nd, hidden), f32)
            for hh in range(heads):
                m = jnp.full((Nd, 1), NEG, f32)
                for head_data in per_dst[t]:
                    m = jnp.maximum(m, jnp.max(head_data[hh][0], axis=-1, keepdims=True))
                denom = jnp.zeros((Nd, 1), f32)
                num = jnp.zeros((Nd, hidden), f32)
                for head_data in per_dst[t]:
                    s, vM = head_data[hh]
                    e = jnp.exp(s - m)            # masked entries underflow to exactly 0
                    denom = denom + jnp.sum(e, axis=-1, keepdims=True)
                    num = num + jnp.dot(e.astype(bf16), vM, preferred_element_type=f32)
                agg = agg + num * pl.reciprocal(jnp.maximum(denom, 1e-20), approx=True)
            agg = agg * valid_refs[t][...]         # nodes with no incoming edges -> 0
            y = mm(jax.nn.gelu(agg).astype(bf16), wa_ref) + ba_ref[...]
            beta = beta_ref[...]                   # (1, hidden) = sigmoid(skip)
            new_h[t] = beta * y + (1.0 - beta) * x
        h = new_h

    # ---- decoder: sigmoid( lin(z_author[input_nodes]) @ z_author^T ) ----
    z_all = h[author_type]
    zall_ref[...] = z_all
    n_input = zin_ref.shape[0]
    for i in range(n_input):                       # SMEM scalar-indexed row gather
        idx = in_nodes_ref[i]
        zin_ref[pl.ds(i, 1), :] = zall_ref[pl.ds(idx, 1), :]
    z_in = zin_ref[...]
    hd = mm(z_in.astype(bf16), w_dec_ref) + b_dec_ref[...]
    logits = lax.dot_general(hd.astype(bf16), z_all.astype(bf16),
                             (((1,), (1,)), ((), ())), preferred_element_type=f32)
    out_ref[...] = jax.nn.sigmoid(logits)


# ----------------------------- wrapper (glue) -------------------------------

def model_forward(params, x_dict, edge_index_dict, input_nodes,
                  node_types, edge_types, heads, hidden):
    node_types = tuple(node_types)
    edge_types = tuple(tuple(e) for e in edge_types)
    dst_types = tuple(t for t in node_types if any(e[2] == t for e in edge_types))
    num_layers = len(params["convs"])
    D = hidden // heads
    inv_sqrt_d = 1.0 / math.sqrt(D)
    f32, bf16 = jnp.float32, jnp.bfloat16

    inputs = []
    # encoder params (bf16 weights / activations, f32 biases)
    for t in node_types:
        inputs += [x_dict[t].astype(bf16),
                   params["lin"][t]["w"].astype(bf16),
                   params["lin"][t]["b"].reshape(1, hidden).astype(f32)]
    # conv-layer params: per-head relation matrices folded into the k/v
    # projections (zero outside that head's column block), score scale folded in
    for layer in params["convs"]:
        for t in dst_types:
            p = layer["types"][t]
            beta = jnp.broadcast_to(jax.nn.sigmoid(p["skip"]), (1, hidden)).astype(f32)
            inputs += [p["wq"].astype(bf16), p["bq"].reshape(1, hidden).astype(f32),
                       p["wa"].astype(bf16), p["ba"].reshape(1, hidden).astype(f32),
                       beta]
        for e in edge_types:
            src = e[0]
            pe = layer["rel"][e]
            pt = layer["types"][src]
            for hh in range(heads):
                cols = slice(hh * D, (hh + 1) * D)
                a_s = pe["a"][hh] * (pe["p"][hh] * inv_sqrt_d)
                m_h = pe["m"][hh]
                WkA = jnp.zeros((hidden, hidden), f32).at[:, cols].set(pt["wk"][:, cols] @ a_s)
                bkA = jnp.zeros((1, hidden), f32).at[:, cols].set((pt["bk"][cols] @ a_s)[None, :])
                WvM = jnp.zeros((hidden, hidden), f32).at[:, cols].set(pt["wv"][:, cols] @ m_h)
                bvM = jnp.zeros((1, hidden), f32).at[:, cols].set((pt["bv"][cols] @ m_h)[None, :])
                inputs += [WkA.astype(bf16), bkA, WvM.astype(bf16), bvM]
    # data-dependent edge_index -> additive bias masks + per-dst validity vectors
    # TODO(synk): duplicate edges are collapsed by the dense mask, whereas PyG's
    # edge-list scatter-softmax counts parallel edges multiple times.
    deg = {t: jnp.zeros((x_dict[t].shape[0],), f32) for t in dst_types}
    for (src, rel, dst) in edge_types:
        ei = edge_index_dict[(src, rel, dst)]
        nd, ns = x_dict[dst].shape[0], x_dict[src].shape[0]
        adj = jnp.zeros((nd, ns), f32).at[ei[1], ei[0]].set(1.0)
        deg[dst] = deg[dst] + adj.sum(axis=1)
        inputs.append(jnp.where(adj > 0.0, 0.0, -1e30).astype(bf16))
    for t in dst_types:
        inputs.append((deg[t] > 0.0).astype(f32).reshape(-1, 1))
    # decoder params + input-node indices (gathered in-kernel from SMEM)
    inputs += [params["dec"]["w"].astype(bf16),
               params["dec"]["b"].reshape(1, hidden).astype(f32)]
    inputs.append(input_nodes.astype(jnp.int32))

    n_author = x_dict["author"].shape[0]
    n_input = input_nodes.shape[0]

    # rough advisory cost estimate for the XLA scheduler
    nn = {t: x_dict[t].shape[0] for t in node_types}
    flops = sum(2 * nn[t] * x_dict[t].shape[1] * hidden for t in node_types)
    trans = 0
    for _ in range(num_layers):
        for t in dst_types:
            flops += 4 * nn[t] * hidden * hidden
            trans += 2 * nn[t] * hidden
        for (src, rel, dst) in edge_types:
            ns_, nd_ = nn[src], nn[dst]
            flops += heads * (4 * ns_ * hidden * hidden + 4 * nd_ * ns_ * hidden)
            trans += heads * nd_ * ns_
    flops += 2 * n_input * hidden * hidden + 2 * n_input * n_author * hidden
    trans += n_input * n_author
    bytes_acc = sum(int(a.size) * a.dtype.itemsize for a in inputs) + n_input * n_author * 4

    kernel = functools.partial(
        _fused_forward_kernel,
        node_types=node_types, edge_types=edge_types, dst_types=dst_types,
        num_layers=num_layers, hidden=hidden, heads=heads, author_type="author")

    in_specs = [pl.BlockSpec(memory_space=pltpu.MemorySpace.VMEM) for _ in inputs]
    in_specs[-1] = pl.BlockSpec(memory_space=pltpu.MemorySpace.SMEM)  # input_nodes

    return pl.pallas_call(
        kernel,
        out_shape=jax.ShapeDtypeStruct((n_input, n_author), f32),
        in_specs=in_specs,
        out_specs=pl.BlockSpec(memory_space=pltpu.MemorySpace.VMEM),
        scratch_shapes=[pltpu.VMEM((n_author, hidden), f32),   # z_author copy for gather
                        pltpu.VMEM((n_input, hidden), f32)],   # gathered rows
        cost_estimate=pl.CostEstimate(flops=int(flops), transcendentals=int(trans),
                                      bytes_accessed=int(bytes_acc)),
    )(*inputs)


# ------------------------------- params init --------------------------------

def init_params(key, hidden, heads, node_types, edge_types, feat_dims, num_layers):
    D = hidden // heads
    ks = iter(jax.random.split(key, 256))

    def nrm(shape, scale=0.1):
        return scale * jax.random.normal(next(ks), shape, jnp.float32)

    params = {"lin": {}, "convs": [], "dec": {}}
    for t in node_types:
        params["lin"][t] = {"w": nrm((feat_dims[t], hidden)), "b": nrm((hidden,))}
    for _ in range(num_layers):
        layer = {"types": {}, "rel": {}}
        for t in node_types:
            layer["types"][t] = {
                "wk": nrm((hidden, hidden)), "bk": nrm((hidden,)),
                "wq": nrm((hidden, hidden)), "bq": nrm((hidden,)),
                "wv": nrm((hidden, hidden)), "bv": nrm((hidden,)),
                "wa": nrm((hidden, hidden)), "ba": nrm((hidden,)),
                "skip": jnp.ones((), jnp.float32),             # PyG init: 1.0
            }
        for e in edge_types:
            layer["rel"][e] = {
                "a": nrm((heads, D, D)),
                "m": nrm((heads, D, D)),
                "p": jnp.ones((heads,), jnp.float32),           # PyG init: ones
            }
        params["convs"].append(layer)
    params["dec"] = {"w": nrm((hidden, hidden)), "b": nrm((hidden,))}
    return params


# --------------------------------- main -------------------------------------

if __name__ == "__main__":
    hidden, heads, num_layers = 32, 2, 1
    node_types = ["author", "paper"]
    edge_types = [
        ("author", "writes", "paper"),
        ("paper", "written_by", "author"),
        ("author", "coauthor", "author"),
    ]
    feat_dims = {"author": 24, "paper": 16}
    num_nodes = {"author": 16, "paper": 12}

    key = jax.random.PRNGKey(0)
    kx_a, kx_p, ke1, ke2, ke3, ke4, ke5, ke6, kin, kpar = jax.random.split(key, 10)

    x_dict = {
        "author": jax.random.normal(kx_a, (num_nodes["author"], feat_dims["author"]), jnp.float32),
        "paper": jax.random.normal(kx_p, (num_nodes["paper"], feat_dims["paper"]), jnp.float32),
    }
    edge_index_dict = {
        ("author", "writes", "paper"): jnp.stack([
            jax.random.randint(ke1, (40,), 0, num_nodes["author"]),
            jax.random.randint(ke2, (40,), 0, num_nodes["paper"]),
        ]).astype(jnp.int32),
        ("paper", "written_by", "author"): jnp.stack([
            jax.random.randint(ke3, (40,), 0, num_nodes["paper"]),
            jax.random.randint(ke4, (40,), 0, num_nodes["author"]),
        ]).astype(jnp.int32),
        ("author", "coauthor", "author"): jnp.stack([
            jax.random.randint(ke5, (30,), 0, num_nodes["author"]),
            jax.random.randint(ke6, (30,), 0, num_nodes["author"]),
        ]).astype(jnp.int32),
    }
    input_nodes = jax.random.randint(kin, (8,), 0, num_nodes["author"]).astype(jnp.int32)

    params = init_params(kpar, hidden, heads, node_types, edge_types, feat_dims, num_layers)

    fwd = jax.jit(functools.partial(
        model_forward,
        node_types=tuple(node_types),
        edge_types=tuple(edge_types),
        heads=heads, hidden=hidden))

    scores = fwd(params, x_dict, edge_index_dict, input_nodes)
    scores = jax.block_until_ready(scores)

    assert scores.shape == (input_nodes.shape[0], num_nodes["author"])
    assert bool(jnp.all(jnp.isfinite(scores)))
    assert bool(jnp.all((scores >= 0.0) & (scores <= 1.0)))
    print("KERNEL_OK")
</pallas_src>

<mosaic_0001>
module attributes {stable_mosaic.version = 11 : i64} {
  func.func @_fused_forward_kernel(%arg0: memref<16x24xbf16, #tpu.memory_space<vmem>>, %arg1: memref<24x32xbf16, #tpu.memory_space<vmem>>, %arg2: memref<1x32xf32, #tpu.memory_space<vmem>>, %arg3: memref<12x16xbf16, #tpu.memory_space<vmem>>, %arg4: memref<16x32xbf16, #tpu.memory_space<vmem>>, %arg5: memref<1x32xf32, #tpu.memory_space<vmem>>, %arg6: memref<32x32xbf16, #tpu.memory_space<vmem>>, %arg7: memref<1x32xf32, #tpu.memory_space<vmem>>, %arg8: memref<32x32xbf16, #tpu.memory_space<vmem>>, %arg9: memref<1x32xf32, #tpu.memory_space<vmem>>, %arg10: memref<1x32xf32, #tpu.memory_space<vmem>>, %arg11: memref<32x32xbf16, #tpu.memory_space<vmem>>, %arg12: memref<1x32xf32, #tpu.memory_space<vmem>>, %arg13: memref<32x32xbf16, #tpu.memory_space<vmem>>, %arg14: memref<1x32xf32, #tpu.memory_space<vmem>>, %arg15: memref<1x32xf32, #tpu.memory_space<vmem>>, %arg16: memref<32x32xbf16, #tpu.memory_space<vmem>>, %arg17: memref<1x32xf32, #tpu.memory_space<vmem>>, %arg18: memref<32x32xbf16, #tpu.memory_space<vmem>>, %arg19: memref<1x32xf32, #tpu.memory_space<vmem>>, %arg20: memref<32x32xbf16, #tpu.memory_space<vmem>>, %arg21: memref<1x32xf32, #tpu.memory_space<vmem>>, %arg22: memref<32x32xbf16, #tpu.memory_space<vmem>>, %arg23: memref<1x32xf32, #tpu.memory_space<vmem>>, %arg24: memref<32x32xbf16, #tpu.memory_space<vmem>>, %arg25: memref<1x32xf32, #tpu.memory_space<vmem>>, %arg26: memref<32x32xbf16, #tpu.memory_space<vmem>>, %arg27: memref<1x32xf32, #tpu.memory_space<vmem>>, %arg28: memref<32x32xbf16, #tpu.memory_space<vmem>>, %arg29: memref<1x32xf32, #tpu.memory_space<vmem>>, %arg30: memref<32x32xbf16, #tpu.memory_space<vmem>>, %arg31: memref<1x32xf32, #tpu.memory_space<vmem>>, %arg32: memref<32x32xbf16, #tpu.memory_space<vmem>>, %arg33: memref<1x32xf32, #tpu.memory_space<vmem>>, %arg34: memref<32x32xbf16, #tpu.memory_space<vmem>>, %arg35: memref<1x32xf32, #tpu.memory_space<vmem>>, %arg36: memref<32x32xbf16, #tpu.memory_space<vmem>>, %arg37: memref<1x32xf32, #tpu.memory_space<vmem>>, %arg38: memref<32x32xbf16, #tpu.memory_space<vmem>>, %arg39: memref<1x32xf32, #tpu.memory_space<vmem>>, %arg40: memref<12x16xbf16, #tpu.memory_space<vmem>>, %arg41: memref<16x12xbf16, #tpu.memory_space<vmem>>, %arg42: memref<16x16xbf16, #tpu.memory_space<vmem>>, %arg43: memref<16x1xf32, #tpu.memory_space<vmem>>, %arg44: memref<12x1xf32, #tpu.memory_space<vmem>>, %arg45: memref<32x32xbf16, #tpu.memory_space<vmem>>, %arg46: memref<1x32xf32, #tpu.memory_space<vmem>>, %arg47: memref<8xi32, #tpu.memory_space<smem>>, %arg48: memref<8x16xf32, #tpu.memory_space<vmem>>, %arg49: memref<16x32xf32, #tpu.memory_space<vmem>>, %arg50: memref<8x32xf32, #tpu.memory_space<vmem>>) attributes {dimension_semantics = [], scalar_prefetch = 0 : i64, scratch_operands = 2 : i64, tpu.core_type = #tpu.core_type<tc>} {
    %c0 = arith.constant 0 : index
    %c0_0 = arith.constant 0 : index
    %0 = vector.load %arg0[%c0, %c0_0] : memref<16x24xbf16, #tpu.memory_space<vmem>>, vector<16x24xbf16>
    %c0_1 = arith.constant 0 : index
    %c0_2 = arith.constant 0 : index
    %1 = vector.load %arg1[%c0_1, %c0_2] : memref<24x32xbf16, #tpu.memory_space<vmem>>, vector<24x32xbf16>
    %cst = arith.constant dense<0.000000e+00> : vector<16x32xf32>
    %2 = tpu.matmul %0, %1, %cst {dimension_numbers = #tpu.dot_dimension_numbers<[1], [0], [0], [1], [0, 0, 1, 1], [], []>} : vector<16x24xbf16>, vector<24x32xbf16>, vector<16x32xf32> -> vector<16x32xf32>
    %c0_3 = arith.constant 0 : index
    %c0_4 = arith.constant 0 : index
    %3 = vector.load %arg2[%c0_3, %c0_4] : memref<1x32xf32, #tpu.memory_space<vmem>>, vector<1x32xf32>
    %4 = vector.broadcast %3 : vector<1x32xf32> to vector<16x32xf32>
    %5 = arith.addf %2, %4 : vector<16x32xf32>
    %cst_5 = arith.constant 0.000000e+00 : f32
    %6 = vector.broadcast %cst_5 : f32 to vector<16x32xf32>
    %7 = arith.maximumf %5, %6 : vector<16x32xf32>
    %c0_6 = arith.constant 0 : index
    %c0_7 = arith.constant 0 : index
    %8 = vector.load %arg3[%c0_6, %c0_7] : memref<12x16xbf16, #tpu.memory_space<vmem>>, vector<12x16xbf16>
    %c0_8 = arith.constant 0 : index
    %c0_9 = arith.constant 0 : index
    %9 = vector.load %arg4[%c0_8, %c0_9] : memref<16x32xbf16, #tpu.memory_space<vmem>>, vector<16x32xbf16>
    %cst_10 = arith.constant dense<0.000000e+00> : vector<12x32xf32>
    %10 = tpu.matmul %8, %9, %cst_10 {dimension_numbers = #tpu.dot_dimension_numbers<[1], [0], [0], [1], [0, 0, 1, 1], [], []>} : vector<12x16xbf16>, vector<16x32xbf16>, vector<12x32xf32> -> vector<12x32xf32>
    %c0_11 = arith.constant 0 : index
    %c0_12 = arith.constant 0 : index
    %11 = vector.load %arg5[%c0_11, %c0_12] : memref<1x32xf32, #tpu.memory_space<vmem>>, vector<1x32xf32>
    %12 = vector.broadcast %11 : vector<1x32xf32> to vector<12x32xf32>
    %13 = arith.addf %10, %12 : vector<12x32xf32>
    %cst_13 = arith.constant 0.000000e+00 : f32
    %14 = vector.broadcast %cst_13 : f32 to vector<12x32xf32>
    %15 = arith.maximumf %13, %14 : vector<12x32xf32>
    %c0_14 = arith.constant 0 : index
    %c0_15 = arith.constant 0 : index
    %16 = vector.load %arg41[%c0_14, %c0_15] : memref<16x12xbf16, #tpu.memory_space<vmem>>, vector<16x12xbf16>
    %17 = arith.extf %16 : vector<16x12xbf16> to vector<16x12xf32>
    %c0_16 = arith.constant 0 : index
    %c0_17 = arith.constant 0 : index
    %18 = vector.load %arg42[%c0_16, %c0_17] : memref<16x16xbf16, #tpu.memory_space<vmem>>, vector<16x16xbf16>
    %19 = arith.extf %18 : vector<16x16xbf16> to vector<16x16xf32>
    %20 = arith.truncf %7 : vector<16x32xf32> to vector<16x32xbf16>
    %21 = arith.truncf %15 : vector<12x32xf32> to vector<12x32xbf16>
    %c0_18 = arith.constant 0 : index
    %c0_19 = arith.constant 0 : index
    %22 = vector.load %arg6[%c0_18, %c0_19] : memref<32x32xbf16, #tpu.memory_space<vmem>>, vector<32x32xbf16>
    %cst_20 = arith.constant dense<0.000000e+00> : vector<16x32xf32>
    %23 = tpu.matmul %20, %22, %cst_20 {dimension_numbers = #tpu.dot_dimension_numbers<[1], [0], [0], [1], [0, 0, 1, 1], [], []>} : vector<16x32xbf16>, vector<32x32xbf16>, vector<16x32xf32> -> vector<16x32xf32>
    %c0_21 = arith.constant 0 : index
    %c0_22 = arith.constant 0 : index
    %24 = vector.load %arg7[%c0_21, %c0_22] : memref<1x32xf32, #tpu.memory_space<vmem>>, vector<1x32xf32>
    %25 = vector.broadcast %24 : vector<1x32xf32> to vector<16x32xf32>
    %26 = arith.addf %23, %25 : vector<16x32xf32>
    %27 = arith.truncf %26 : vector<16x32xf32> to vector<16x32xbf16>
    %c0_23 = arith.constant 0 : index
    %c0_24 = arith.constant 0 : index
    %28 = vector.load %arg24[%c0_23, %c0_24] : memref<32x32xbf16, #tpu.memory_space<vmem>>, vector<32x32xbf16>
    %cst_25 = arith.constant dense<0.000000e+00> : vector<12x32xf32>
    %29 = tpu.matmul %21, %28, %cst_25 {dimension_numbers = #tpu.dot_dimension_numbers<[1], [0], [0], [1], [0, 0, 1, 1], [], []>} : vector<12x32xbf16>, vector<32x32xbf16>, vector<12x32xf32> -> vector<12x32xf32>
    %c0_26 = arith.constant 0 : index
    %c0_27 = arith.constant 0 : index
    %30 = vector.load %arg25[%c0_26, %c0_27] : memref<1x32xf32, #tpu.memory_space<vmem>>, vector<1x32xf32>
    %31 = vector.broadcast %30 : vector<1x32xf32> to vector<12x32xf32>
    %32 = arith.addf %29, %31 : vector<12x32xf32>
    %33 = arith.truncf %32 : vector<12x32xf32> to vector<12x32xbf16>
    %c0_28 = arith.constant 0 : index
    %c0_29 = arith.constant 0 : index
    %34 = vector.load %arg26[%c0_28, %c0_29] : memref<32x32xbf16, #tpu.memory_space<vmem>>, vector<32x32xbf16>
    %cst_30 = arith.constant dense<0.000000e+00> : vector<12x32xf32>
    %35 = tpu.matmul %21, %34, %cst_30 {dimension_numbers = #tpu.dot_dimension_numbers<[1], [0], [0], [1], [0, 0, 1, 1], [], []>} : vector<12x32xbf16>, vector<32x32xbf16>, vector<12x32xf32> -> vector<12x32xf32>
    %c0_31 = arith.constant 0 : index
    %c0_32 = arith.constant 0 : index
    %36 = vector.load %arg27[%c0_31, %c0_32] : memref<1x32xf32, #tpu.memory_space<vmem>>, vector<1x32xf32>
    %37 = vector.broadcast %36 : vector<1x32xf32> to vector<12x32xf32>
    %38 = arith.addf %35, %37 : vector<12x32xf32>
    %39 = arith.truncf %38 : vector<12x32xf32> to vector<12x32xbf16>
    %cst_33 = arith.constant dense<0.000000e+00> : vector<16x12xf32>
    %40 = tpu.matmul %27, %33, %cst_33 {dimension_numbers = #tpu.dot_dimension_numbers<[1], [1], [0], [0], [0, 0, 1, 0], [], []>} : vector<16x32xbf16>, vector<12x32xbf16>, vector<16x12xf32> -> vector<16x12xf32>
    %41 = arith.addf %40, %17 : vector<16x12xf32>
    %c0_34 = arith.constant 0 : index
    %c0_35 = arith.constant 0 : index
    %42 = vector.load %arg28[%c0_34, %c0_35] : memref<32x32xbf16, #tpu.memory_space<vmem>>, vector<32x32xbf16>
    %cst_36 = arith.constant dense<0.000000e+00> : vector<12x32xf32>
    %43 = tpu.matmul %21, %42, %cst_36 {dimension_numbers = #tpu.dot_dimension_numbers<[1], [0], [0], [1], [0, 0, 1, 1], [], []>} : vector<12x32xbf16>, vector<32x32xbf16>, vector<12x32xf32> -> vector<12x32xf32>
    %c0_37 = arith.constant 0 : index
    %c0_38 = arith.constant 0 : index
    %44 = vector.load %arg29[%c0_37, %c0_38] : memref<1x32xf32, #tpu.memory_space<vmem>>, vector<1x32xf32>
    %45 = vector.broadcast %44 : vector<1x32xf32> to vector<12x32xf32>
    %46 = arith.addf %43, %45 : vector<12x32xf32>
    %47 = arith.truncf %46 : vector<12x32xf32> to vector<12x32xbf16>
    %c0_39 = arith.constant 0 : index
    %c0_40 = arith.constant 0 : index
    %48 = vector.load %arg30[%c0_39, %c0_40] : memref<32x32xbf16, #tpu.memory_space<vmem>>, vector<32x32xbf16>
    %cst_41 = arith.constant dense<0.000000e+00> : vector<12x32xf32>
    %49 = tpu.matmul %21, %48, %cst_41 {dimension_numbers = #tpu.dot_dimension_numbers<[1], [0], [0], [1], [0, 0, 1, 1], [], []>} : vector<12x32xbf16>, vector<32x32xbf16>, vector<12x32xf32> -> vector<12x32xf32>
    %c0_42 = arith.constant 0 : index
    %c0_43 = arith.constant 0 : index
    %50 = vector.load %arg31[%c0_42, %c0_43] : memref<1x32xf32, #tpu.memory_space<vmem>>, vector<1x32xf32>
    %51 = vector.broadcast %50 : vector<1x32xf32> to vector<12x32xf32>
    %52 = arith.addf %49, %51 : vector<12x32xf32>
    %53 = arith.truncf %52 : vector<12x32xf32> to vector<12x32xbf16>
    %cst_44 = arith.constant dense<0.000000e+00> : vector<16x12xf32>
    %54 = tpu.matmul %27, %47, %cst_44 {dimension_numbers = #tpu.dot_dimension_numbers<[1], [1], [0], [0], [0, 0, 1, 0], [], []>} : vector<16x32xbf16>, vector<12x32xbf16>, vector<16x12xf32> -> vector<16x12xf32>
    %55 = arith.addf %54, %17 : vector<16x12xf32>
    %c0_45 = arith.constant 0 : index
    %c0_46 = arith.constant 0 : index
    %56 = vector.load %arg32[%c0_45, %c0_46] : memref<32x32xbf16, #tpu.memory_space<vmem>>, vector<32x32xbf16>
    %cst_47 = arith.constant dense<0.000000e+00> : vector<16x32xf32>
    %57 = tpu.matmul %20, %56, %cst_47 {dimension_numbers = #tpu.dot_dimension_numbers<[1], [0], [0], [1], [0, 0, 1, 1], [], []>} : vector<16x32xbf16>, vector<32x32xbf16>, vector<16x32xf32> -> vector<16x32xf32>
    %c0_48 = arith.constant 0 : index
    %c0_49 = arith.constant 0 : index
    %58 = vector.load %arg33[%c0_48, %c0_49] : memref<1x32xf32, #tpu.memory_space<vmem>>, vector<1x32xf32>
    %59 = vector.broadcast %58 : vector<1x32xf32> to vector<16x32xf32>
    %60 = arith.addf %57, %59 : vector<16x32xf32>
    %61 = arith.truncf %60 : vector<16x32xf32> to vector<16x32xbf16>
    %c0_50 = arith.constant 0 : index
    %c0_51 = arith.constant 0 : index
    %62 = vector.load %arg34[%c0_50, %c0_51] : memref<32x32xbf16, #tpu.memory_space<vmem>>, vector<32x32xbf16>
    %cst_52 = arith.constant dense<0.000000e+00> : vector<16x32xf32>
    %63 = tpu.matmul %20, %62, %cst_52 {dimension_numbers = #tpu.dot_dimension_numbers<[1], [0], [0], [1], [0, 0, 1, 1], [], []>} : vector<16x32xbf16>, vector<32x32xbf16>, vector<16x32xf32> -> vector<16x32xf32>
    %c0_53 = arith.constant 0 : index
    %c0_54 = arith.constant 0 : index
    %64 = vector.load %arg35[%c0_53, %c0_54] : memref<1x32xf32, #tpu.memory_space<vmem>>, vector<1x32xf32>
    %65 = vector.broadcast %64 : vector<1x32xf32> to vector<16x32xf32>
    %66 = arith.addf %63, %65 : vector<16x32xf32>
    %67 = arith.truncf %66 : vector<16x32xf32> to vector<16x32xbf16>
    %cst_55 = arith.constant dense<0.000000e+00> : vector<16x16xf32>
    %68 = tpu.matmul %27, %61, %cst_55 {dimension_numbers = #tpu.dot_dimension_numbers<[1], [1], [0], [0], [0, 0, 1, 0], [], []>} : vector<16x32xbf16>, vector<16x32xbf16>, vector<16x16xf32> -> vector<16x16xf32>
    %69 = arith.addf %68, %19 : vector<16x16xf32>
    %c0_56 = arith.constant 0 : index
    %c0_57 = arith.constant 0 : index
    %70 = vector.load %arg36[%c0_56, %c0_57] : memref<32x32xbf16, #tpu.memory_space<vmem>>, vector<32x32xbf16>
    %cst_58 = arith.constant dense<0.000000e+00> : vector<16x32xf32>
    %71 = tpu.matmul %20, %70, %cst_58 {dimension_numbers = #tpu.dot_dimension_numbers<[1], [0], [0], [1], [0, 0, 1, 1], [], []>} : vector<16x32xbf16>, vector<32x32xbf16>, vector<16x32xf32> -> vector<16x32xf32>
    %c0_59 = arith.constant 0 : index
    %c0_60 = arith.constant 0 : index
    %72 = vector.load %arg37[%c0_59, %c0_60] : memref<1x32xf32, #tpu.memory_space<vmem>>, vector<1x32xf32>
    %73 = vector.broadcast %72 : vector<1x32xf32> to vector<16x32xf32>
    %74 = arith.addf %71, %73 : vector<16x32xf32>
    %75 = arith.truncf %74 : vector<16x32xf32> to vector<16x32xbf16>
    %c0_61 = arith.constant 0 : index
    %c0_62 = arith.constant 0 : index
    %76 = vector.load %arg38[%c0_61, %c0_62] : memref<32x32xbf16, #tpu.memory_space<vmem>>, vector<32x32xbf16>
    %cst_63 = arith.constant dense<0.000000e+00> : vector<16x32xf32>
    %77 = tpu.matmul %20, %76, %cst_63 {dimension_numbers = #tpu.dot_dimension_numbers<[1], [0], [0], [1], [0, 0, 1, 1], [], []>} : vector<16x32xbf16>, vector<32x32xbf16>, vector<16x32xf32> -> vector<16x32xf32>
    %c0_64 = arith.constant 0 : index
    %c0_65 = arith.constant 0 : index
    %78 = vector.load %arg39[%c0_64, %c0_65] : memref<1x32xf32, #tpu.memory_space<vmem>>, vector<1x32xf32>
    %79 = vector.broadcast %78 : vector<1x32xf32> to vector<16x32xf32>
    %80 = arith.addf %77, %79 : vector<16x32xf32>
    %81 = arith.truncf %80 : vector<16x32xf32> to vector<16x32xbf16>
    %cst_66 = arith.constant dense<0.000000e+00> : vector<16x16xf32>
    %82 = tpu.matmul %27, %75, %cst_66 {dimension_numbers = #tpu.dot_dimension_numbers<[1], [1], [0], [0], [0, 0, 1, 0], [], []>} : vector<16x32xbf16>, vector<16x32xbf16>, vector<16x16xf32> -> vector<16x16xf32>
    %83 = arith.addf %82, %19 : vector<16x16xf32>
    %cst_67 = arith.constant 0.000000e+00 : f32
    %84 = vector.broadcast %cst_67 : f32 to vector<16x32xf32>
    %cst_68 = arith.constant -1.000000e+30 : f32
    %85 = vector.broadcast %cst_68 : f32 to vector<16x1xf32>
    %cst_69 = arith.constant dense<0xFF800000> : vector<16xf32>
    %86 = vector.multi_reduction <maximumf>, %41, %cst_69 [1] : vector<16x12xf32> to vector<16xf32>
    %87 = vector.shape_cast %86 : vector<16xf32> to vector<16x1xf32>
    %88 = arith.maximumf %85, %87 : vector<16x1xf32>
    %cst_70 = arith.constant dense<0xFF800000> : vector<16xf32>
    %89 = vector.multi_reduction <maximumf>, %69, %cst_70 [1] : vector<16x16xf32> to vector<16xf32>
    %90 = vector.shape_cast %89 : vector<16xf32> to vector<16x1xf32>
    %91 = arith.maximumf %88, %90 : vector<16x1xf32>
    %cst_71 = arith.constant 0.000000e+00 : f32
    %92 = vector.broadcast %cst_71 : f32 to vector<16x1xf32>
    %cst_72 = arith.constant 0.000000e+00 : f32
    %93 = vector.broadcast %cst_72 : f32 to vector<16x32xf32>
    %94 = vector.broadcast %91 : vector<16x1xf32> to vector<16x12xf32>
    %95 = arith.subf %41, %94 : vector<16x12xf32>
    %96 = math.exp %95 : vector<16x12xf32>
    %cst_73 = arith.constant dense<0.000000e+00> : vector<16xf32>
    %97 = vector.multi_reduction <add>, %96, %cst_73 [1] : vector<16x12xf32> to vector<16xf32>
    %98 = vector.shape_cast %97 : vector<16xf32> to vector<16x1xf32>
    %99 = arith.addf %92, %98 : vector<16x1xf32>
    %100 = arith.truncf %96 : vector<16x12xf32> to vector<16x12xbf16>
    %cst_74 = arith.constant dense<0.000000e+00> : vector<16x32xf32>
    %101 = tpu.matmul %100, %39, %cst_74 {dimension_numbers = #tpu.dot_dimension_numbers<[1], [0], [0], [1], [0, 0, 1, 1], [], []>} : vector<16x12xbf16>, vector<12x32xbf16>, vector<16x32xf32> -> vector<16x32xf32>
    %102 = arith.addf %93, %101 : vector<16x32xf32>
    %103 = vector.broadcast %91 : vector<16x1xf32> to vector<16x16xf32>
    %104 = arith.subf %69, %103 : vector<16x16xf32>
    %105 = math.exp %104 : vector<16x16xf32>
    %cst_75 = arith.constant dense<0.000000e+00> : vector<16xf32>
    %106 = vector.multi_reduction <add>, %105, %cst_75 [1] : vector<16x16xf32> to vector<16xf32>
    %107 = vector.shape_cast %106 : vector<16xf32> to vector<16x1xf32>
    %108 = arith.addf %99, %107 : vector<16x1xf32>
    %109 = arith.truncf %105 : vector<16x16xf32> to vector<16x16xbf16>
    %cst_76 = arith.constant dense<0.000000e+00> : vector<16x32xf32>
    %110 = tpu.matmul %109, %67, %cst_76 {dimension_numbers = #tpu.dot_dimension_numbers<[1], [0], [0], [1], [0, 0, 1, 1], [], []>} : vector<16x16xbf16>, vector<16x32xbf16>, vector<16x32xf32> -> vector<16x32xf32>
    %111 = arith.addf %102, %110 : vector<16x32xf32>
    %cst_77 = arith.constant 9.99999968E-21 : f32
    %112 = vector.broadcast %cst_77 : f32 to vector<16x1xf32>
    %113 = arith.maximumf %108, %112 : vector<16x1xf32>
    %114 = tpu.reciprocal %113 {approx = true} : vector<16x1xf32> -> vector<16x1xf32>
    %115 = vector.broadcast %114 : vector<16x1xf32> to vector<16x32xf32>
    %116 = arith.mulf %111, %115 : vector<16x32xf32>
    %117 = arith.addf %84, %116 : vector<16x32xf32>
    %cst_78 = arith.constant -1.000000e+30 : f32
    %118 = vector.broadcast %cst_78 : f32 to vector<16x1xf32>
    %cst_79 = arith.constant dense<0xFF800000> : vector<16xf32>
    %119 = vector.multi_reduction <maximumf>, %55, %cst_79 [1] : vector<16x12xf32> to vector<16xf32>
    %120 = vector.shape_cast %119 : vector<16xf32> to vector<16x1xf32>
    %121 = arith.maximumf %118, %120 : vector<16x1xf32>
    %cst_80 = arith.constant dense<0xFF800000> : vector<16xf32>
    %122 = vector.multi_reduction <maximumf>, %83, %cst_80 [1] : vector<16x16xf32> to vector<16xf32>
    %123 = vector.shape_cast %122 : vector<16xf32> to vector<16x1xf32>
    %124 = arith.maximumf %121, %123 : vector<16x1xf32>
    %cst_81 = arith.constant 0.000000e+00 : f32
    %125 = vector.broadcast %cst_81 : f32 to vector<16x1xf32>
    %cst_82 = arith.constant 0.000000e+00 : f32
    %126 = vector.broadcast %cst_82 : f32 to vector<16x32xf32>
    %127 = vector.broadcast %124 : vector<16x1xf32> to vector<16x12xf32>
    %128 = arith.subf %55, %127 : vector<16x12xf32>
    %129 = math.exp %128 : vector<16x12xf32>
    %cst_83 = arith.constant dense<0.000000e+00> : vector<16xf32>
    %130 = vector.multi_reduction <add>, %129, %cst_83 [1] : vector<16x12xf32> to vector<16xf32>
    %131 = vector.shape_cast %130 : vector<16xf32> to vector<16x1xf32>
    %132 = arith.addf %125, %131 : vector<16x1xf32>
    %133 = arith.truncf %129 : vector<16x12xf32> to vector<16x12xbf16>
    %cst_84 = arith.constant dense<0.000000e+00> : vector<16x32xf32>
    %134 = tpu.matmul %133, %53, %cst_84 {dimension_numbers = #tpu.dot_dimension_numbers<[1], [0], [0], [1], [0, 0, 1, 1], [], []>} : vector<16x12xbf16>, vector<12x32xbf16>, vector<16x32xf32> -> vector<16x32xf32>
    %135 = arith.addf %126, %134 : vector<16x32xf32>
    %136 = vector.broadcast %124 : vector<16x1xf32> to vector<16x16xf32>
    %137 = arith.subf %83, %136 : vector<16x16xf32>
    %138 = math.exp %137 : vector<16x16xf32>
    %cst_85 = arith.constant dense<0.000000e+00> : vector<16xf32>
    %139 = vector.multi_reduction <add>, %138, %cst_85 [1] : vector<16x16xf32> to vector<16xf32>
    %140 = vector.shape_cast %139 : vector<16xf32> to vector<16x1xf32>
    %141 = arith.addf %132, %140 : vector<16x1xf32>
    %142 = arith.truncf %138 : vector<16x16xf32> to vector<16x16xbf16>
    %cst_86 = arith.constant dense<0.000000e+00> : vector<16x32xf32>
    %143 = tpu.matmul %142, %81, %cst_86 {dimension_numbers = #tpu.dot_dimension_numbers<[1], [0], [0], [1], [0, 0, 1, 1], [], []>} : vector<16x16xbf16>, vector<16x32xbf16>, vector<16x32xf32> -> vector<16x32xf32>
    %144 = arith.addf %135, %143 : vector<16x32xf32>
    %cst_87 = arith.constant 9.99999968E-21 : f32
    %145 = vector.broadcast %cst_87 : f32 to vector<16x1xf32>
    %146 = arith.maximumf %141, %145 : vector<16x1xf32>
    %147 = tpu.reciprocal %146 {approx = true} : vector<16x1xf32> -> vector<16x1xf32>
    %148 = vector.broadcast %147 : vector<16x1xf32> to vector<16x32xf32>
    %149 = arith.mulf %144, %148 : vector<16x32xf32>
    %150 = arith.addf %117, %149 : vector<16x32xf32>
    %c0_88 = arith.constant 0 : index
    %c0_89 = arith.constant 0 : index
    %151 = vector.load %arg43[%c0_88, %c0_89] : memref<16x1xf32, #tpu.memory_space<vmem>>, vector<16x1xf32>
    %152 = vector.broadcast %151 : vector<16x1xf32> to vector<16x32xf32>
    %153 = arith.mulf %150, %152 : vector<16x32xf32>
    %154 = arith.mulf %153, %153 : vector<16x32xf32>
    %155 = arith.mulf %153, %154 : vector<16x32xf32>
    %cst_90 = arith.constant 4.471500e-02 : f32
    %156 = vector.broadcast %cst_90 : f32 to vector<16x32xf32>
    %157 = arith.mulf %156, %155 : vector<16x32xf32>
    %158 = arith.addf %153, %157 : vector<16x32xf32>
    %cst_91 = arith.constant 0.797884583 : f32
    %159 = vector.broadcast %cst_91 : f32 to vector<16x32xf32>
    %160 = arith.mulf %159, %158 : vector<16x32xf32>
    %161 = math.tanh %160 : vector<16x32xf32>
    %cst_92 = arith.constant 1.000000e+00 : f32
    %162 = vector.broadcast %cst_92 : f32 to vector<16x32xf32>
    %163 = arith.addf %162, %161 : vector<16x32xf32>
    %cst_93 = arith.constant 5.000000e-01 : f32
    %164 = vector.broadcast %cst_93 : f32 to vector<16x32xf32>
    %165 = arith.mulf %164, %163 : vector<16x32xf32>
    %166 = arith.mulf %153, %165 : vector<16x32xf32>
    %167 = arith.truncf %166 : vector<16x32xf32> to vector<16x32xbf16>
    %c0_94 = arith.constant 0 : index
    %c0_95 = arith.constant 0 : index
    %168 = vector.load %arg8[%c0_94, %c0_95] : memref<32x32xbf16, #tpu.memory_space<vmem>>, vector<32x32xbf16>
    %cst_96 = arith.constant dense<0.000000e+00> : vector<16x32xf32>
    %169 = tpu.matmul %167, %168, %cst_96 {dimension_numbers = #tpu.dot_dimension_numbers<[1], [0], [0], [1], [0, 0, 1, 1], [], []>} : vector<16x32xbf16>, vector<32x32xbf16>, vector<16x32xf32> -> vector<16x32xf32>
    %c0_97 = arith.constant 0 : index
    %c0_98 = arith.constant 0 : index
    %170 = vector.load %arg9[%c0_97, %c0_98] : memref<1x32xf32, #tpu.memory_space<vmem>>, vector<1x32xf32>
    %171 = vector.broadcast %170 : vector<1x32xf32> to vector<16x32xf32>
    %172 = arith.addf %169, %171 : vector<16x32xf32>
    %c0_99 = arith.constant 0 : index
    %c0_100 = arith.constant 0 : index
    %173 = vector.load %arg10[%c0_99, %c0_100] : memref<1x32xf32, #tpu.memory_space<vmem>>, vector<1x32xf32>
    %174 = vector.broadcast %173 : vector<1x32xf32> to vector<16x32xf32>
    %175 = arith.mulf %174, %172 : vector<16x32xf32>
    %cst_101 = arith.constant 1.000000e+00 : f32
    %176 = vector.broadcast %cst_101 : f32 to vector<1x32xf32>
    %177 = arith.subf %176, %173 : vector<1x32xf32>
    %178 = vector.broadcast %177 : vector<1x32xf32> to vector<16x32xf32>
    %179 = arith.mulf %178, %7 : vector<16x32xf32>
    %180 = arith.addf %175, %179 : vector<16x32xf32>
    %c0_102 = arith.constant 0 : index
    %c0_103 = arith.constant 0 : index
    %181 = vector.load %arg49[%c0_102, %c0_103] : memref<16x32xf32, #tpu.memory_space<vmem>>, vector<16x32xf32>
    tpu.vector_store %arg49[%c0_102, %c0_103], %180 {strides = array<i32>} : memref<16x32xf32, #tpu.memory_space<vmem>>, vector<16x32xf32>,
    %c0_104 = arith.constant 0 : index
    %182 = memref.load %arg47[%c0_104] : memref<8xi32, #tpu.memory_space<smem>>
    %183 = arith.index_cast %182 : i32 to index
    %c0_105 = arith.constant 0 : index
    %184 = vector.load %arg49[%183, %c0_105] : memref<16x32xf32, #tpu.memory_space<vmem>>, vector<1x32xf32>
    %c0_106 = arith.constant 0 : index
    %c0_107 = arith.constant 0 : index
    %185 = vector.load %arg50[%c0_106, %c0_107] : memref<8x32xf32, #tpu.memory_space<vmem>>, vector<1x32xf32>
    tpu.vector_store %arg50[%c0_106, %c0_107], %184 {strides = array<i32>} : memref<8x32xf32, #tpu.memory_space<vmem>>, vector<1x32xf32>,
    %c1 = arith.constant 1 : index
    %186 = memref.load %arg47[%c1] : memref<8xi32, #tpu.memory_space<smem>>
    %187 = arith.index_cast %186 : i32 to index
    %c0_108 = arith.constant 0 : index
    %188 = vector.load %arg49[%187, %c0_108] : memref<16x32xf32, #tpu.memory_space<vmem>>, vector<1x32xf32>
    %c1_109 = arith.constant 1 : index
    %c0_110 = arith.constant 0 : index
    %189 = vector.load %arg50[%c1_109, %c0_110] : memref<8x32xf32, #tpu.memory_space<vmem>>, vector<1x32xf32>
    tpu.vector_store %arg50[%c1_109, %c0_110], %188 {strides = array<i32>} : memref<8x32xf32, #tpu.memory_space<vmem>>, vector<1x32xf32>,
    %c2 = arith.constant 2 : index
    %190 = memref.load %arg47[%c2] : memref<8xi32, #tpu.memory_space<smem>>
    %191 = arith.index_cast %190 : i32 to index
    %c0_111 = arith.constant 0 : index
    %192 = vector.load %arg49[%191, %c0_111] : memref<16x32xf32, #tpu.memory_space<vmem>>, vector<1x32xf32>
    %c2_112 = arith.constant 2 : index
    %c0_113 = arith.constant 0 : index
    %193 = vector.load %arg50[%c2_112, %c0_113] : memref<8x32xf32, #tpu.memory_space<vmem>>, vector<1x32xf32>
    tpu.vector_store %arg50[%c2_112, %c0_113], %192 {strides = array<i32>} : memref<8x32xf32, #tpu.memory_space<vmem>>, vector<1x32xf32>,
    %c3 = arith.constant 3 : index
    %194 = memref.load %arg47[%c3] : memref<8xi32, #tpu.memory_space<smem>>
    %195 = arith.index_cast %194 : i32 to index
    %c0_114 = arith.constant 0 : index
    %196 = vector.load %arg49[%195, %c0_114] : memref<16x32xf32, #tpu.memory_space<vmem>>, vector<1x32xf32>
    %c3_115 = arith.constant 3 : index
    %c0_116 = arith.constant 0 : index
    %197 = vector.load %arg50[%c3_115, %c0_116] : memref<8x32xf32, #tpu.memory_space<vmem>>, vector<1x32xf32>
    tpu.vector_store %arg50[%c3_115, %c0_116], %196 {strides = array<i32>} : memref<8x32xf32, #tpu.memory_space<vmem>>, vector<1x32xf32>,
    %c4 = arith.constant 4 : index
    %198 = memref.load %arg47[%c4] : memref<8xi32, #tpu.memory_space<smem>>
    %199 = arith.index_cast %198 : i32 to index
    %c0_117 = arith.constant 0 : index
    %200 = vector.load %arg49[%199, %c0_117] : memref<16x32xf32, #tpu.memory_space<vmem>>, vector<1x32xf32>
    %c4_118 = arith.constant 4 : index
    %c0_119 = arith.constant 0 : index
    %201 = vector.load %arg50[%c4_118, %c0_119] : memref<8x32xf32, #tpu.memory_space<vmem>>, vector<1x32xf32>
    tpu.vector_store %arg50[%c4_118, %c0_119], %200 {strides = array<i32>} : memref<8x32xf32, #tpu.memory_space<vmem>>, vector<1x32xf32>,
    %c5 = arith.constant 5 : index
    %202 = memref.load %arg47[%c5] : memref<8xi32, #tpu.memory_space<smem>>
    %203 = arith.index_cast %202 : i32 to index
    %c0_120 = arith.constant 0 : index
    %204 = vector.load %arg49[%203, %c0_120] : memref<16x32xf32, #tpu.memory_space<vmem>>, vector<1x32xf32>
    %c5_121 = arith.constant 5 : index
    %c0_122 = arith.constant 0 : index
    %205 = vector.load %arg50[%c5_121, %c0_122] : memref<8x32xf32, #tpu.memory_space<vmem>>, vector<1x32xf32>
    tpu.vector_store %arg50[%c5_121, %c0_122], %204 {strides = array<i32>} : memref<8x32xf32, #tpu.memory_space<vmem>>, vector<1x32xf32>,
    %c6 = arith.constant 6 : index
    %206 = memref.load %arg47[%c6] : memref<8xi32, #tpu.memory_space<smem>>
    %207 = arith.index_cast %206 : i32 to index
    %c0_123 = arith.constant 0 : index
    %208 = vector.load %arg49[%207, %c0_123] : memref<16x32xf32, #tpu.memory_space<vmem>>, vector<1x32xf32>
    %c6_124 = arith.constant 6 : index
    %c0_125 = arith.constant 0 : index
    %209 = vector.load %arg50[%c6_124, %c0_125] : memref<8x32xf32, #tpu.memory_space<vmem>>, vector<1x32xf32>
    tpu.vector_store %arg50[%c6_124, %c0_125], %208 {strides = array<i32>} : memref<8x32xf32, #tpu.memory_space<vmem>>, vector<1x32xf32>,
    %c7 = arith.constant 7 : index
    %210 = memref.load %arg47[%c7] : memref<8xi32, #tpu.memory_space<smem>>
    %211 = arith.index_cast %210 : i32 to index
    %c0_126 = arith.constant 0 : index
    %212 = vector.load %arg49[%211, %c0_126] : memref<16x32xf32, #tpu.memory_space<vmem>>, vector<1x32xf32>
    %c7_127 = arith.constant 7 : index
    %c0_128 = arith.constant 0 : index
    %213 = vector.load %arg50[%c7_127, %c0_128] : memref<8x32xf32, #tpu.memory_space<vmem>>, vector<1x32xf32>
    tpu.vector_store %arg50[%c7_127, %c0_128], %212 {strides = array<i32>} : memref<8x32xf32, #tpu.memory_space<vmem>>, vector<1x32xf32>,
    %c0_129 = arith.constant 0 : index
    %c0_130 = arith.constant 0 : index
    %214 = vector.load %arg50[%c0_129, %c0_130] : memref<8x32xf32, #tpu.memory_space<vmem>>, vector<8x32xf32>
    %215 = arith.truncf %214 : vector<8x32xf32> to vector<8x32xbf16>
    %c0_131 = arith.constant 0 : index
    %c0_132 = arith.constant 0 : index
    %216 = vector.load %arg45[%c0_131, %c0_132] : memref<32x32xbf16, #tpu.memory_space<vmem>>, vector<32x32xbf16>
    %cst_133 = arith.constant dense<0.000000e+00> : vector<8x32xf32>
    %217 = tpu.matmul %215, %216, %cst_133 {dimension_numbers = #tpu.dot_dimension_numbers<[1], [0], [0], [1], [0, 0, 1, 1], [], []>} : vector<8x32xbf16>, vector<32x32xbf16>, vector<8x32xf32> -> vector<8x32xf32>
    %c0_134 = arith.constant 0 : index
    %c0_135 = arith.constant 0 : index
    %218 = vector.load %arg46[%c0_134, %c0_135] : memref<1x32xf32, #tpu.memory_space<vmem>>, vector<1x32xf32>
    %219 = vector.broadcast %218 : vector<1x32xf32> to vector<8x32xf32>
    %220 = arith.addf %217, %219 : vector<8x32xf32>
    %221 = arith.truncf %220 : vector<8x32xf32> to vector<8x32xbf16>
    %222 = arith.truncf %180 : vector<16x32xf32> to vector<16x32xbf16>
    %cst_136 = arith.constant dense<0.000000e+00> : vector<8x16xf32>
    %223 = tpu.matmul %221, %222, %cst_136 {dimension_numbers = #tpu.dot_dimension_numbers<[1], [1], [0], [0], [0, 0, 1, 0], [], []>} : vector<8x32xbf16>, vector<16x32xbf16>, vector<8x16xf32> -> vector<8x16xf32>
    %224 = arith.negf %223 : vector<8x16xf32>
    %225 = math.exp %224 : vector<8x16xf32>
    %cst_137 = arith.constant 1.000000e+00 : f32
    %226 = vector.broadcast %cst_137 : f32 to vector<8x16xf32>
    %227 = arith.addf %226, %225 : vector<8x16xf32>
    %228 = arith.divf %226, %227 : vector<8x16xf32>
    %c0_138 = arith.constant 0 : index
    %c0_139 = arith.constant 0 : index
    %229 = vector.load %arg48[%c0_138, %c0_139] : memref<8x16xf32, #tpu.memory_space<vmem>>, vector<8x16xf32>
    tpu.vector_store %arg48[%c0_138, %c0_139], %228 {strides = array<i32>} : memref<8x16xf32, #tpu.memory_space<vmem>>, vector<8x16xf32>,
    return
  }
}

</mosaic_0001>

<llo_original>
// kernel: model_forward.1
$region0: #{model_forward.1}
  #allocation0 [shape = 'u32[]', space=smem, size = 0x4, offset = 0x4, fixed_abs, tag = 'smem constant byte address 0x4 - core index']
  #allocation1 [shape = 'u32[144,128]{1,0:T(1,128)}', space=vmem, size = 0x12000, scoped, tag = 'internal scratch']
  #allocation2 [shape = 'f32[16,32]{1,0:T(8,128)}', space=vmem, size = 0x2000, scoped, tag = 'scratch operand']
  #allocation3 [shape = 'f32[8,32]{1,0:T(8,128)}', space=vmem, size = 0x1000, scoped, tag = 'scratch operand']
  %s0 = inlined_call_operand.smem [shape: u32[49], index: -1, kind: input, shape index: {}]
  %s1 = sld [smem:[%s0]]
  %s2 = scalar_lea.smem %s0, 1
  %s3 = sld [smem:[%s2]]
  %s4 = scalar_lea.smem %s0, 2
  %s5 = sld [smem:[%s4]]
  %s6 = scalar_lea.smem %s0, 3
  %s7 = sld [smem:[%s6]]
  %s8 = scalar_lea.smem %s0, 4
  %s9 = sld [smem:[%s8]]
  %s10 = scalar_lea.smem %s0, 5
  %s11 = sld [smem:[%s10]]
  %s12 = scalar_lea.smem %s0, 6
  %s13 = sld [smem:[%s12]]
  %s14 = scalar_lea.smem %s0, 7
  %s15 = sld [smem:[%s14]]
  %s16 = scalar_lea.smem %s0, 8
  %s17 = sld [smem:[%s16]]
  %s18 = scalar_lea.smem %s0, 9
  %s19 = sld [smem:[%s18]]
  %s20 = scalar_lea.smem %s0, 10
  %s21 = sld [smem:[%s20]]
  %s22 = scalar_lea.smem %s0, 11
  %s23 = sld [smem:[%s22]]
  %s24 = scalar_lea.smem %s0, 12
  %s25 = sld [smem:[%s24]]
  %s26 = scalar_lea.smem %s0, 13
  %s27 = sld [smem:[%s26]]
  %s28 = scalar_lea.smem %s0, 14
  %s29 = sld [smem:[%s28]]
  %s30 = scalar_lea.smem %s0, 15
  %s31 = sld [smem:[%s30]]
  %s32 = scalar_lea.smem %s0, 16
  %s33 = sld [smem:[%s32]]
  %s34 = scalar_lea.smem %s0, 17
  %s35 = sld [smem:[%s34]]
  %s36 = scalar_lea.smem %s0, 18
  %s37 = sld [smem:[%s36]]
  %s38 = scalar_lea.smem %s0, 19
  %s39 = sld [smem:[%s38]]
  %s40 = scalar_lea.smem %s0, 20
  %s41 = sld [smem:[%s40]]
  %s42 = scalar_lea.smem %s0, 21
  %s43 = sld [smem:[%s42]]
  %s44 = scalar_lea.smem %s0, 22
  %s45 = sld [smem:[%s44]]
  %s46 = scalar_lea.smem %s0, 23
  %s47 = sld [smem:[%s46]]
  %s48 = scalar_lea.smem %s0, 24
  %s49 = sld [smem:[%s48]]
  %s50 = scalar_lea.smem %s0, 25
  %s51 = sld [smem:[%s50]]
  %s52 = scalar_lea.smem %s0, 26
  %s53 = sld [smem:[%s52]]
  %s54 = scalar_lea.smem %s0, 27
  %s55 = sld [smem:[%s54]]
  %s56 = scalar_lea.smem %s0, 28
  %s57 = sld [smem:[%s56]]
  %s58 = scalar_lea.smem %s0, 29
  %s59 = sld [smem:[%s58]]
  %s60 = scalar_lea.smem %s0, 30
  %s61 = sld [smem:[%s60]]
  %s62 = scalar_lea.smem %s0, 31
  %s63 = sld [smem:[%s62]]
  %s64 = scalar_lea.smem %s0, 32
  %s65 = sld [smem:[%s64]]
  %s66 = scalar_lea.smem %s0, 33
  %s67 = sld [smem:[%s66]]
  %s68 = scalar_lea.smem %s0, 34
  %s69 = sld [smem:[%s68]]
  %s70 = scalar_lea.smem %s0, 35
  %s71 = sld [smem:[%s70]]
  %s72 = scalar_lea.smem %s0, 36
  %s73 = sld [smem:[%s72]]
  %s74 = scalar_lea.smem %s0, 37
  %s75 = sld [smem:[%s74]]
  %s76 = scalar_lea.smem %s0, 38
  %s77 = sld [smem:[%s76]]
  %s78 = scalar_lea.smem %s0, 39
  %s79 = sld [smem:[%s78]]
  %s80 = scalar_lea.smem %s0, 40
  %s81 = sld [smem:[%s80]]
  %s82 = scalar_lea.smem %s0, 41
  %s83 = sld [smem:[%s82]]
  %s84 = scalar_lea.smem %s0, 42
  %s85 = sld [smem:[%s84]]
  %s86 = scalar_lea.smem %s0, 43
  %s87 = sld [smem:[%s86]]
  %s88 = scalar_lea.smem %s0, 44
  %s89 = sld [smem:[%s88]]
  %s90 = scalar_lea.smem %s0, 45
  %s91 = sld [smem:[%s90]]
  %s92 = scalar_lea.smem %s0, 46
  %s93 = sld [smem:[%s92]]
  %s94 = scalar_lea.smem %s0, 47
  %s95 = sld [smem:[%s94]]
  %s96 = scalar_lea.smem %s0, 48
  %s97 = sld [smem:[%s96]]
  %s98 = sld [smem:[#allocation0]]
  $region206: #{model_forward.1} parent=0
    _
  %s100 = ssub.s32 1, %s98
  %s101 = scalar_select 0, %s100, %s98
  $region1: #{model_forward.1} parent=0
    #allocation4 [shape = 'u8[512]{0}', space=smem, size = 0x200, scoped, tag = 'input window, operand 47, single buffered']
    #allocation5 [shape = 's32[1]{0}', space=sflag, size = 0x4, scoped, tag = 'scoped memory for model_forward.1']
    #allocation6 [shape = 's32[1]{0}', space=sflag, size = 0x4, scoped, tag = 'scoped memory for model_forward.1']
    #allocation7 [shape = 'u8[4096]{0}', space=vmem, size = 0x1000, scoped, tag = 'output window, operand 0, single buffered']
    %102 = vsyncpa [#allocation6], 0
    %103 = vsyncpa [#allocation5], 0
    // Predicated region
    $region2: #{model_forward.1} parent=1 // pred_check
      _
    $region3: #{model_forward.1} parent=1 // pred_check_branch
      %105 = sbr.rel (0) target = $region5
    $region4: #{model_forward.1} parent=1 // pred_region
      _
    $region5: #{model_forward.1} parent=1 // pred_fallthru
      _
    // Predicated region
    $region6: #{model_forward.1} parent=1 // pred_check
      _
    $region7: #{model_forward.1} parent=1 // pred_check_branch
      %107 = sbr.rel (0) target = $region9
    $region8: #{model_forward.1} parent=1 // pred_region
      _
    $region9: #{model_forward.1} parent=1 // pred_fallthru
      _
    // Predicated region
    $region10: #{model_forward.1} parent=1 // pred_check
      _
    $region11: #{model_forward.1} parent=1 // pred_check_branch
      %109 = sbr.rel (0) target = $region13
    $region12: #{model_forward.1} parent=1 // pred_region
      _
    $region13: #{model_forward.1} parent=1 // pred_fallthru
      _
    // Predicated region
    $region14: #{model_forward.1} parent=1 // pred_check
      _
    $region15: #{model_forward.1} parent=1 // pred_check_branch
      %111 = sbr.rel (0) target = $region17
    $region16: #{model_forward.1} parent=1 // pred_region
      _
    $region17: #{model_forward.1} parent=1 // pred_fallthru
      _
    // Predicated region
    $region18: #{model_forward.1} parent=1 // pred_check
      _
    $region19: #{model_forward.1} parent=1 // pred_check_branch
      %113 = sbr.rel (0) target = $region21
    $region20: #{model_forward.1} parent=1 // pred_region
      _
    $region21: #{model_forward.1} parent=1 // pred_fallthru
      _
    // Predicated region
    $region22: #{model_forward.1} parent=1 // pred_check
      _
    $region23: #{model_forward.1} parent=1 // pred_check_branch
      %115 = sbr.rel (0) target = $region25
    $region24: #{model_forward.1} parent=1 // pred_region
      _
    $region25: #{model_forward.1} parent=1 // pred_fallthru
      _
    // Predicated region
    $region26: #{model_forward.1} parent=1 // pred_check
      _
    $region27: #{model_forward.1} parent=1 // pred_check_branch
      %117 = sbr.rel (0) target = $region29
    $region28: #{model_forward.1} parent=1 // pred_region
      _
    $region29: #{model_forward.1} parent=1 // pred_fallthru
      _
    // Predicated region
    $region30: #{model_forward.1} parent=1 // pred_check
      _
    $region31: #{model_forward.1} parent=1 // pred_check_branch
      %119 = sbr.rel (0) target = $region33
    $region32: #{model_forward.1} parent=1 // pred_region
      _
    $region33: #{model_forward.1} parent=1 // pred_fallthru
      _
    // Predicated region
    $region34: #{model_forward.1} parent=1 // pred_check
      _
    $region35: #{model_forward.1} parent=1 // pred_check_branch
      %121 = sbr.rel (0) target = $region37
    $region36: #{model_forward.1} parent=1 // pred_region
      _
    $region37: #{model_forward.1} parent=1 // pred_fallthru
      _
    // Predicated region
    $region38: #{model_forward.1} parent=1 // pred_check
      _
    $region39: #{model_forward.1} parent=1 // pred_check_branch
      %123 = sbr.rel (0) target = $region41
    $region40: #{model_forward.1} parent=1 // pred_region
      _
    $region41: #{model_forward.1} parent=1 // pred_fallthru
      _
    // Predicated region
    $region42: #{model_forward.1} parent=1 // pred_check
      _
    $region43: #{model_forward.1} parent=1 // pred_check_branch
      %125 = sbr.rel (0) target = $region45
    $region44: #{model_forward.1} parent=1 // pred_region
      _
    $region45: #{model_forward.1} parent=1 // pred_fallthru
      _
    // Predicated region
    $region46: #{model_forward.1} parent=1 // pred_check
      _
    $region47: #{model_forward.1} parent=1 // pred_check_branch
      %127 = sbr.rel (0) target = $region49
    $region48: #{model_forward.1} parent=1 // pred_region
      _
    $region49: #{model_forward.1} parent=1 // pred_fallthru
      _
    // Predicated region
    $region50: #{model_forward.1} parent=1 // pred_check
      _
    $region51: #{model_forward.1} parent=1 // pred_check_branch
      %129 = sbr.rel (0) target = $region53
    $region52: #{model_forward.1} parent=1 // pred_region
      _
    $region53: #{model_forward.1} parent=1 // pred_fallthru
      _
    // Predicated region
    $region54: #{model_forward.1} parent=1 // pred_check
      _
    $region55: #{model_forward.1} parent=1 // pred_check_branch
      %131 = sbr.rel (0) target = $region57
    $region56: #{model_forward.1} parent=1 // pred_region
      _
    $region57: #{model_forward.1} parent=1 // pred_fallthru
      _
    // Predicated region
    $region58: #{model_forward.1} parent=1 // pred_check
      _
    $region59: #{model_forward.1} parent=1 // pred_check_branch
      %133 = sbr.rel (0) target = $region61
    $region60: #{model_forward.1} parent=1 // pred_region
      _
    $region61: #{model_forward.1} parent=1 // pred_fallthru
      _
    // Predicated region
    $region62: #{model_forward.1} parent=1 // pred_check
      _
    $region63: #{model_forward.1} parent=1 // pred_check_branch
      %135 = sbr.rel (0) target = $region65
    $region64: #{model_forward.1} parent=1 // pred_region
      _
    $region65: #{model_forward.1} parent=1 // pred_fallthru
      _
    // Predicated region
    $region66: #{model_forward.1} parent=1 // pred_check
      _
    $region67: #{model_forward.1} parent=1 // pred_check_branch
      %137 = sbr.rel (0) target = $region69
    $region68: #{model_forward.1} parent=1 // pred_region
      _
    $region69: #{model_forward.1} parent=1 // pred_fallthru
      _
    // Predicated region
    $region70: #{model_forward.1} parent=1 // pred_check
      _
    $region71: #{model_forward.1} parent=1 // pred_check_branch
      %139 = sbr.rel (0) target = $region73
    $region72: #{model_forward.1} parent=1 // pred_region
      _
    $region73: #{model_forward.1} parent=1 // pred_fallthru
      _
    // Predicated region
    $region74: #{model_forward.1} parent=1 // pred_check
      _
    $region75: #{model_forward.1} parent=1 // pred_check_branch
      %141 = sbr.rel (0) target = $region77
    $region76: #{model_forward.1} parent=1 // pred_region
      _
    $region77: #{model_forward.1} parent=1 // pred_fallthru
      _
    // Predicated region
    $region78: #{model_forward.1} parent=1 // pred_check
      _
    $region79: #{model_forward.1} parent=1 // pred_check_branch
      %143 = sbr.rel (0) target = $region81
    $region80: #{model_forward.1} parent=1 // pred_region
      _
    $region81: #{model_forward.1} parent=1 // pred_fallthru
      _
    // Predicated region
    $region82: #{model_forward.1} parent=1 // pred_check
      _
    $region83: #{model_forward.1} parent=1 // pred_check_branch
      %145 = sbr.rel (0) target = $region85
    $region84: #{model_forward.1} parent=1 // pred_region
      _
    $region85: #{model_forward.1} parent=1 // pred_fallthru
      _
    // Predicated region
    $region86: #{model_forward.1} parent=1 // pred_check
      _
    $region87: #{model_forward.1} parent=1 // pred_check_branch
      %147 = sbr.rel (0) target = $region89
    $region88: #{model_forward.1} parent=1 // pred_region
      _
    $region89: #{model_forward.1} parent=1 // pred_fallthru
      _
    // Predicated region
    $region90: #{model_forward.1} parent=1 // pred_check
      _
    $region91: #{model_forward.1} parent=1 // pred_check_branch
      %149 = sbr.rel (0) target = $region93
    $region92: #{model_forward.1} parent=1 // pred_region
      _
    $region93: #{model_forward.1} parent=1 // pred_fallthru
      _
    // Predicated region
    $region94: #{model_forward.1} parent=1 // pred_check
      _
    $region95: #{model_forward.1} parent=1 // pred_check_branch
      %151 = sbr.rel (0) target = $region97
    $region96: #{model_forward.1} parent=1 // pred_region
      _
    $region97: #{model_forward.1} parent=1 // pred_fallthru
      _
    // Predicated region
    $region98: #{model_forward.1} parent=1 // pred_check
      _
    $region99: #{model_forward.1} parent=1 // pred_check_branch
      %153 = sbr.rel (0) target = $region101
    $region100: #{model_forward.1} parent=1 // pred_region
      _
    $region101: #{model_forward.1} parent=1 // pred_fallthru
      _
    // Predicated region
    $region102: #{model_forward.1} parent=1 // pred_check
      _
    $region103: #{model_forward.1} parent=1 // pred_check_branch
      %155 = sbr.rel (0) target = $region105
    $region104: #{model_forward.1} parent=1 // pred_region
      _
    $region105: #{model_forward.1} parent=1 // pred_fallthru
      _
    // Predicated region
    $region106: #{model_forward.1} parent=1 // pred_check
      _
    $region107: #{model_forward.1} parent=1 // pred_check_branch
      %157 = sbr.rel (0) target = $region109
    $region108: #{model_forward.1} parent=1 // pred_region
      _
    $region109: #{model_forward.1} parent=1 // pred_fallthru
      _
    // Predicated region
    $region110: #{model_forward.1} parent=1 // pred_check
      _
    $region111: #{model_forward.1} parent=1 // pred_check_branch
      %159 = sbr.rel (0) target = $region113
    $region112: #{model_forward.1} parent=1 // pred_region
      _
    $region113: #{model_forward.1} parent=1 // pred_fallthru
      _
    // Predicated region
    $region114: #{model_forward.1} parent=1 // pred_check
      _
    $region115: #{model_forward.1} parent=1 // pred_check_branch
      %161 = sbr.rel (0) target = $region117
    $region116: #{model_forward.1} parent=1 // pred_region
      _
    $region117: #{model_forward.1} parent=1 // pred_fallthru
      _
    // Predicated region
    $region118: #{model_forward.1} parent=1 // pred_check
      _
    $region119: #{model_forward.1} parent=1 // pred_check_branch
      %163 = sbr.rel (0) target = $region121
    $region120: #{model_forward.1} parent=1 // pred_region
      _
    $region121: #{model_forward.1} parent=1 // pred_fallthru
      _
    // Predicated region
    $region122: #{model_forward.1} parent=1 // pred_check
      _
    $region123: #{model_forward.1} parent=1 // pred_check_branch
      %165 = sbr.rel (0) target = $region125
    $region124: #{model_forward.1} parent=1 // pred_region
      _
    $region125: #{model_forward.1} parent=1 // pred_fallthru
      _
    // Predicated region
    $region126: #{model_forward.1} parent=1 // pred_check
      _
    $region127: #{model_forward.1} parent=1 // pred_check_branch
      %167 = sbr.rel (0) target = $region129
    $region128: #{model_forward.1} parent=1 // pred_region
      _
    $region129: #{model_forward.1} parent=1 // pred_fallthru
      _
    // Predicated region
    $region130: #{model_forward.1} parent=1 // pred_check
      _
    $region131: #{model_forward.1} parent=1 // pred_check_branch
      %169 = sbr.rel (0) target = $region133
    $region132: #{model_forward.1} parent=1 // pred_region
      _
    $region133: #{model_forward.1} parent=1 // pred_fallthru
      _
    // Predicated region
    $region134: #{model_forward.1} parent=1 // pred_check
      _
    $region135: #{model_forward.1} parent=1 // pred_check_branch
      %171 = sbr.rel (0) target = $region137
    $region136: #{model_forward.1} parent=1 // pred_region
      _
    $region137: #{model_forward.1} parent=1 // pred_fallthru
      _
    // Predicated region
    $region138: #{model_forward.1} parent=1 // pred_check
      _
    $region139: #{model_forward.1} parent=1 // pred_check_branch
      %173 = sbr.rel (0) target = $region141
    $region140: #{model_forward.1} parent=1 // pred_region
      _
    $region141: #{model_forward.1} parent=1 // pred_fallthru
      _
    // Predicated region
    $region142: #{model_forward.1} parent=1 // pred_check
      _
    $region143: #{model_forward.1} parent=1 // pred_check_branch
      %175 = sbr.rel (0) target = $region145
    $region144: #{model_forward.1} parent=1 // pred_region
      _
    $region145: #{model_forward.1} parent=1 // pred_fallthru
      _
    // Predicated region
    $region146: #{model_forward.1} parent=1 // pred_check
      _
    $region147: #{model_forward.1} parent=1 // pred_check_branch
      %177 = sbr.rel (0) target = $region149
    $region148: #{model_forward.1} parent=1 // pred_region
      _
    $region149: #{model_forward.1} parent=1 // pred_fallthru
      _
    // Predicated region
    $region150: #{model_forward.1} parent=1 // pred_check
      _
    $region151: #{model_forward.1} parent=1 // pred_check_branch
      %179 = sbr.rel (0) target = $region153
    $region152: #{model_forward.1} parent=1 // pred_region
      _
    $region153: #{model_forward.1} parent=1 // pred_fallthru
      _
    // Predicated region
    $region154: #{model_forward.1} parent=1 // pred_check
      _
    $region155: #{model_forward.1} parent=1 // pred_check_branch
      %181 = sbr.rel (0) target = $region157
    $region156: #{model_forward.1} parent=1 // pred_region
      _
    $region157: #{model_forward.1} parent=1 // pred_fallthru
      _
    // Predicated region
    $region158: #{model_forward.1} parent=1 // pred_check
      _
    $region159: #{model_forward.1} parent=1 // pred_check_branch
      %183 = sbr.rel (0) target = $region161
    $region160: #{model_forward.1} parent=1 // pred_region
      _
    $region161: #{model_forward.1} parent=1 // pred_fallthru
      _
    // Predicated region
    $region162: #{model_forward.1} parent=1 // pred_check
      _
    $region163: #{model_forward.1} parent=1 // pred_check_branch
      %185 = sbr.rel (0) target = $region165
    $region164: #{model_forward.1} parent=1 // pred_region
      _
    $region165: #{model_forward.1} parent=1 // pred_fallthru
      _
    // Predicated region
    $region166: #{model_forward.1} parent=1 // pred_check
      _
    $region167: #{model_forward.1} parent=1 // pred_check_branch
      %187 = sbr.rel (0) target = $region169
    $region168: #{model_forward.1} parent=1 // pred_region
      _
    $region169: #{model_forward.1} parent=1 // pred_fallthru
      _
    // Predicated region
    $region170: #{model_forward.1} parent=1 // pred_check
      _
    $region171: #{model_forward.1} parent=1 // pred_check_branch
      %189 = sbr.rel (0) target = $region173
    $region172: #{model_forward.1} parent=1 // pred_region
      _
    $region173: #{model_forward.1} parent=1 // pred_fallthru
      _
    // Predicated region
    $region174: #{model_forward.1} parent=1 // pred_check
      _
    $region175: #{model_forward.1} parent=1 // pred_check_branch
      %191 = sbr.rel (0) target = $region177
    $region176: #{model_forward.1} parent=1 // pred_region
      _
    $region177: #{model_forward.1} parent=1 // pred_fallthru
      _
    // Predicated region
    $region178: #{model_forward.1} parent=1 // pred_check
      _
    $region179: #{model_forward.1} parent=1 // pred_check_branch
      %193 = sbr.rel (0) target = $region181
    $region180: #{model_forward.1} parent=1 // pred_region
      _
    $region181: #{model_forward.1} parent=1 // pred_fallthru
      _
    // Predicated region
    $region182: #{model_forward.1} parent=1 // pred_check
      _
    $region183: #{model_forward.1} parent=1 // pred_check_branch
      %195 = sbr.rel (0) target = $region185
    $region184: #{model_forward.1} parent=1 // pred_region
      _
    $region185: #{model_forward.1} parent=1 // pred_fallthru
      _
    // Predicated region
    $region186: #{model_forward.1} parent=1 // pred_check
      _
    $region187: #{model_forward.1} parent=1 // pred_check_branch
      %197 = sbr.rel (0) target = $region189
    $region188: #{model_forward.1} parent=1 // pred_region
      _
    $region189: #{model_forward.1} parent=1 // pred_fallthru
      _
    // Predicated region
    $region190: #{model_forward.1} parent=1 // pred_check
      _
    $region191: #{model_forward.1} parent=1 // pred_check_branch
      %199 = sbr.rel (0) target = $region193
    $region192: #{model_forward.1} parent=1 // pred_region
      %s201 = ssub.s32 16, 16
      %202 = vsyncadd [#allocation6], %s201
      %s204 = sshll.u32 %s95, 4
      %s205 = int_to_ptr.vmem [resolvable:$true] %s204
      %207 = dma.vmem_to_smem %s205, 16, [#allocation4], [#allocation6]
    $region193: #{model_forward.1} parent=1 // pred_fallthru
      _
    // Predicated region
    $region194: #{model_forward.1} parent=1 // pred_check
      _
    $region195: #{model_forward.1} parent=1 // pred_check_branch
      %209 = sbr.rel (0) target = $region197
    $region196: #{model_forward.1} parent=1 // pred_region
      %210 = dma.done [#allocation6], 16
    $region197: #{model_forward.1} parent=1 // pred_fallthru
      _
    %211 = sfence
    %v213 = vld [vmem:[%s1] sm:$0xf]
    %v214 = vld [vmem:[%s1 + $0x4] sm:$0xf]
    %v215 = vld [vmem:[%s3] sm:$0xf]
    %v216 = vld [vmem:[%s3 + $0x4] sm:$0xf]
    %v217 = vld [vmem:[%s3 + $0x8] sm:$0xf]
    %v218 = vld [vmem:[%s5] sm:$0x1]
    %v220 = vlaneseq
    %v221 = vshrl.u32 %v220, 7
    %v222 = vsub.s32 0, %v221
    %v223 = vrot.slane %v218, %v222
    %v227 = vunpack.c.l.b16 %v213
    %v228 = vunpack.c.l.b16 %v214
    %v229 = vpack.c.b16 %v228, %v227
    %v233 = vunpack.c.l.b16 %v215
    %v234 = vunpack.c.l.b16 %v216
    %v235 = vunpack.c.l.b16 %v217
    %v236 = vpack.c.b16 %v234, %v233
    %v237 = vpack.c.b16 %v235, %v235
    %vm239 = vcmask 195584
    %v241 = vsel %vm239, %v229, 0
    %vm243 = vcmask 1043456
    %v245 = vsel %vm243, %v237, 0
    %247 = vmatprep.subr.bf16.mxu0 0
    %248 = vmatpush1.bf16.msra.mxu0 %v236
    %249 = vmatprep.subr.bf16.mxu0 0
    %250 = vmatpush1.bf16.msra.mxu0 %v245
    %251 = vmatprep.subr.bf16.mxu0 0
    %252 = vmatpush1.bf16.msra.mxu0 0
    %253 = vmatprep.subr.bf16.mxu0 0
    %254 = vmatpush1.bf16.msra.mxu0 0
    %255 = vmatprep.subr.bf16.mxu0 0
    %256 = vmatpush1.bf16.msra.mxu0 0
    %257 = vmatprep.subr.bf16.mxu0 0
    %258 = vmatpush1.bf16.msra.mxu0 0
    %259 = vmatprep.subr.bf16.mxu0 0
    %260 = vmatpush1.bf16.msra.mxu0 0
    %261 = vmatprep.subr.bf16.mxu0 0
    %262 = vmatpush1.bf16.msra.mxu0 0
    %263 = vmatprep.subr.bf16.mxu0 0
    %264 = vmatpush1.bf16.msra.mxu0 0
    %265 = vmatprep.subr.bf16.mxu0 0
    %266 = vmatpush1.bf16.msra.mxu0 0
    %267 = vmatprep.subr.bf16.mxu0 0
    %268 = vmatpush1.bf16.msra.mxu0 0
    %269 = vmatprep.subr.bf16.mxu0 0
    %270 = vmatpush1.bf16.msra.mxu0 0
    %271 = vmatprep.subr.bf16.mxu0 0
    %272 = vmatpush1.bf16.msra.mxu0 0
    %273 = vmatprep.subr.bf16.mxu0 0
    %274 = vmatpush1.bf16.msra.mxu0 0
    %275 = vmatprep.subr.bf16.mxu0 0
    %276 = vmatpush1.bf16.msra.mxu0 0
    %277 = vmatprep.subr.bf16.mxu0 0
    %278 = vmatpush1.bf16.msra.mxu0 0
    %279 = vmatprep.mubr.bf16.mxu0 0
    %280 = vmatmul.mubr.bf16.gmra.mrb[0].mxu0 %v241
    %v281 = vpop.f32.mrb[0].mxu0
    %v282 = vadd.f32 %v223, %v281
    %v283 = vpop.f32.mrb[0].mxu0
    %v284 = vpop.f32.mrb[0].mxu0
    %v285 = vadd.f32 %v223, %v284
    %v286 = vpop.f32.mrb[0].mxu0
    %287 = vdwg.mxu0
    %v288 = vmax.f32 %v282, 0.0
    %v289 = vmax.f32 %v285, 0.0
    %v290 = vld [vmem:[%s7] sm:$0xf]
    %v291 = vld [vmem:[%s7 + $0x4] sm:$0x3]
    %v292 = vld [vmem:[%s9] sm:$0xf]
    %v293 = vld [vmem:[%s9 + $0x4] sm:$0xf]
    %v294 = vld [vmem:[%s11] sm:$0x1]
    %v296 = vlaneseq
    %v297 = vshrl.u32 %v296, 7
    %v298 = vsub.s32 0, %v297
    %v299 = vrot.slane %v294, %v298
    %v303 = vunpack.c.l.b16 %v290
    %v304 = vunpack.c.l.b16 %v291
    %v305 = vpack.c.b16 %v304, %v303
    %v308 = vunpack.c.l.b16 %v292
    %v309 = vunpack.c.l.b16 %v293
    %v310 = vpack.c.b16 %v309, %v308
    %vm312 = vcmask 130048
    %v314 = vsel %vm312, %v305, 0
    %316 = vmatprep.subr.bf16.mxu0 0
    %317 = vmatpush1.bf16.msra.mxu0 %v310
    %318 = vmatprep.subr.bf16.mxu0 0
    %319 = vmatpush1.bf16.msra.mxu0 0
    %320 = vmatprep.subr.bf16.mxu0 0
    %321 = vmatpush1.bf16.msra.mxu0 0
    %322 = vmatprep.subr.bf16.mxu0 0
    %323 = vmatpush1.bf16.msra.mxu0 0
    %324 = vmatprep.subr.bf16.mxu0 0
    %325 = vmatpush1.bf16.msra.mxu0 0
    %326 = vmatprep.subr.bf16.mxu0 0
    %327 = vmatpush1.bf16.msra.mxu0 0
    %328 = vmatprep.subr.bf16.mxu0 0
    %329 = vmatpush1.bf16.msra.mxu0 0
    %330 = vmatprep.subr.bf16.mxu0 0
    %331 = vmatpush1.bf16.msra.mxu0 0
    %332 = vmatprep.subr.bf16.mxu0 0
    %333 = vmatpush1.bf16.msra.mxu0 0
    %334 = vmatprep.subr.bf16.mxu0 0
    %335 = vmatpush1.bf16.msra.mxu0 0
    %336 = vmatprep.subr.bf16.mxu0 0
    %337 = vmatpush1.bf16.msra.mxu0 0
    %338 = vmatprep.subr.bf16.mxu0 0
    %339 = vmatpush1.bf16.msra.mxu0 0
    %340 = vmatprep.subr.bf16.mxu0 0
    %341 = vmatpush1.bf16.msra.mxu0 0
    %342 = vmatprep.subr.bf16.mxu0 0
    %343 = vmatpush1.bf16.msra.mxu0 0
    %344 = vmatprep.subr.bf16.mxu0 0
    %345 = vmatpush1.bf16.msra.mxu0 0
    %346 = vmatprep.subr.bf16.mxu0 0
    %347 = vmatpush1.bf16.msra.mxu0 0
    %348 = vmatprep.mubr.bf16.mxu0 0
    %349 = vmatmul.mubr.bf16.gmra.mrb[0].mxu0 %v314
    %v350 = vpop.f32.mrb[0].mxu0
    %v351 = vadd.f32 %v299, %v350
    %v352 = vpop.f32.mrb[0].mxu0
    %v353 = vpop.f32.mrb[0].mxu0
    %v354 = vadd.f32 %v299, %v353
    %v355 = vpop.f32.mrb[0].mxu0
    %356 = vdwg.mxu0
    %v357 = vmax.f32 %v351, 0.0
    %v358 = vmax.f32 %v354, 0.0
    %v359 = vld [vmem:[%s83] sm:$0xf]
    %v360 = vld [vmem:[%s83 + $0x4] sm:$0xf]
    %v361 = vunpack.c.l.bf16 %v359
    %v362 = vunpack.c.l.bf16 %v360
    %v363 = vld [vmem:[%s85] sm:$0xf]
    %v364 = vld [vmem:[%s85 + $0x4] sm:$0xf]
    %v365 = vunpack.c.l.bf16 %v363
    %v366 = vunpack.c.l.bf16 %v364
    %v367 = vpack.c.bf16 %v289, %v288
    %v368 = vpack.c.bf16 %v358, %v357
    %v369 = vld [vmem:[%s13] sm:$0xf]
    %v370 = vld [vmem:[%s13 + $0x4] sm:$0xf]
    %v371 = vld [vmem:[%s13 + $0x8] sm:$0xf]
    %v372 = vld [vmem:[%s13 + $0xc] sm:$0xf]
    %v373 = vld [vmem:[%s15] sm:$0x1]
    %v375 = vlaneseq
    %v376 = vshrl.u32 %v375, 7
    %v377 = vsub.s32 0, %v376
    %v378 = vrot.slane %v373, %v377
    %v384 = vunpack.c.l.b16 %v369
    %v385 = vunpack.c.l.b16 %v370
    %v386 = vunpack.c.l.b16 %v371
    %v387 = vunpack.c.l.b16 %v372
    %v388 = vpack.c.b16 %v385, %v384
    %v389 = vpack.c.b16 %v387, %v386
    %vm392 = vcmask 261120
    %v394 = vsel %vm392, %v367, 0
    %396 = vmatprep.subr.bf16.mxu0 0
    %397 = vmatpush1.bf16.msra.mxu0 %v388
    %398 = vmatprep.subr.bf16.mxu0 0
    %399 = vmatpush1.bf16.msra.mxu0 %v389
    %400 = vmatprep.subr.bf16.mxu0 0
    %401 = vmatpush1.bf16.msra.mxu0 0
    %402 = vmatprep.subr.bf16.mxu0 0
    %403 = vmatpush1.bf16.msra.mxu0 0
    %404 = vmatprep.subr.bf16.mxu0 0
    %405 = vmatpush1.bf16.msra.mxu0 0
    %406 = vmatprep.subr.bf16.mxu0 0
    %407 = vmatpush1.bf16.msra.mxu0 0
    %408 = vmatprep.subr.bf16.mxu0 0
    %409 = vmatpush1.bf16.msra.mxu0 0
    %410 = vmatprep.subr.bf16.mxu0 0
    %411 = vmatpush1.bf16.msra.mxu0 0
    %412 = vmatprep.subr.bf16.mxu0 0
    %413 = vmatpush1.bf16.msra.mxu0 0
    %414 = vmatprep.subr.bf16.mxu0 0
    %415 = vmatpush1.bf16.msra.mxu0 0
    %416 = vmatprep.subr.bf16.mxu0 0
    %417 = vmatpush1.bf16.msra.mxu0 0
    %418 = vmatprep.subr.bf16.mxu0 0
    %419 = vmatpush1.bf16.msra.mxu0 0
    %420 = vmatprep.subr.bf16.mxu0 0
    %421 = vmatpush1.bf16.msra.mxu0 0
    %422 = vmatprep.subr.bf16.mxu0 0
    %423 = vmatpush1.bf16.msra.mxu0 0
    %424 = vmatprep.subr.bf16.mxu0 0
    %425 = vmatpush1.bf16.msra.mxu0 0
    %426 = vmatprep.subr.bf16.mxu0 0
    %427 = vmatpush1.bf16.msra.mxu0 0
    %428 = vmatprep.mubr.bf16.mxu0 0
    %429 = vmatmul.mubr.bf16.gmra.mrb[0].mxu0 %v394
    %v430 = vpop.f32.mrb[0].mxu0
    %v431 = vadd.f32 %v378, %v430
    %v432 = vpop.f32.mrb[0].mxu0
    %v433 = vpop.f32.mrb[0].mxu0
    %v434 = vadd.f32 %v378, %v433
    %v435 = vpop.f32.mrb[0].mxu0
    %436 = vdwg.mxu0
    %v437 = vpack.c.bf16 %v434, %v431
    %v438 = vld [vmem:[%s49] sm:$0xf]
    %v439 = vld [vmem:[%s49 + $0x4] sm:$0xf]
    %v440 = vld [vmem:[%s49 + $0x8] sm:$0xf]
    %v441 = vld [vmem:[%s49 + $0xc] sm:$0xf]
    %v442 = vld [vmem:[%s51] sm:$0x1]
    %v444 = vlaneseq
    %v445 = vshrl.u32 %v444, 7
    %v446 = vsub.s32 0, %v445
    %v447 = vrot.slane %v442, %v446
    %v453 = vunpack.c.l.b16 %v438
    %v454 = vunpack.c.l.b16 %v439
    %v455 = vunpack.c.l.b16 %v440
    %v456 = vunpack.c.l.b16 %v441
    %v457 = vpack.c.b16 %v454, %v453
    %v458 = vpack.c.b16 %v456, %v455
    %v462 = vsel %vm392, %v368, 0
    %464 = vmatprep.subr.bf16.mxu0 0
    %465 = vmatpush1.bf16.msra.mxu0 %v457
    %466 = vmatprep.subr.bf16.mxu0 0
    %467 = vmatpush1.bf16.msra.mxu0 %v458
    %468 = vmatprep.subr.bf16.mxu0 0
    %469 = vmatpush1.bf16.msra.mxu0 0
    %470 = vmatprep.subr.bf16.mxu0 0
    %471 = vmatpush1.bf16.msra.mxu0 0
    %472 = vmatprep.subr.bf16.mxu0 0
    %473 = vmatpush1.bf16.msra.mxu0 0
    %474 = vmatprep.subr.bf16.mxu0 0
    %475 = vmatpush1.bf16.msra.mxu0 0
    %476 = vmatprep.subr.bf16.mxu0 0
    %477 = vmatpush1.bf16.msra.mxu0 0
    %478 = vmatprep.subr.bf16.mxu0 0
    %479 = vmatpush1.bf16.msra.mxu0 0
    %480 = vmatprep.subr.bf16.mxu0 0
    %481 = vmatpush1.bf16.msra.mxu0 0
    %482 = vmatprep.subr.bf16.mxu0 0
    %483 = vmatpush1.bf16.msra.mxu0 0
    %484 = vmatprep.subr.bf16.mxu0 0
    %485 = vmatpush1.bf16.msra.mxu0 0
    %486 = vmatprep.subr.bf16.mxu0 0
    %487 = vmatpush1.bf16.msra.mxu0 0
    %488 = vmatprep.subr.bf16.mxu0 0
    %489 = vmatpush1.bf16.msra.mxu0 0
    %490 = vmatprep.subr.bf16.mxu0 0
    %491 = vmatpush1.bf16.msra.mxu0 0
    %492 = vmatprep.subr.bf16.mxu0 0
    %493 = vmatpush1.bf16.msra.mxu0 0
    %494 = vmatprep.subr.bf16.mxu0 0
    %495 = vmatpush1.bf16.msra.mxu0 0
    %496 = vmatprep.mubr.bf16.mxu0 0
    %497 = vmatmul.mubr.bf16.gmra.mrb[0].mxu0 %v462
    %v498 = vpop.f32.mrb[0].mxu0
    %v499 = vadd.f32 %v447, %v498
    %v500 = vpop.f32.mrb[0].mxu0
    %v501 = vpop.f32.mrb[0].mxu0
    %v502 = vadd.f32 %v447, %v501
    %v503 = vpop.f32.mrb[0].mxu0
    %504 = vdwg.mxu0
    %v505 = vpack.c.bf16 %v502, %v499
    %v506 = vld [vmem:[%s53] sm:$0xf]
    %v507 = vld [vmem:[%s53 + $0x4] sm:$0xf]
    %v508 = vld [vmem:[%s53 + $0x8] sm:$0xf]
    %v509 = vld [vmem:[%s53 + $0xc] sm:$0xf]
    %v510 = vld [vmem:[%s55] sm:$0x1]
    %v512 = vlaneseq
    %v513 = vshrl.u32 %v512, 7
    %v514 = vsub.s32 0, %v513
    %v515 = vrot.slane %v510, %v514
    %v521 = vunpack.c.l.b16 %v506
    %v522 = vunpack.c.l.b16 %v507
    %v523 = vunpack.c.l.b16 %v508
    %v524 = vunpack.c.l.b16 %v509
    %v525 = vpack.c.b16 %v522, %v521
    %v526 = vpack.c.b16 %v524, %v523
    %529 = vmatprep.subr.bf16.mxu0 0
    %530 = vmatpush1.bf16.msra.mxu0 %v525
    %531 = vmatprep.subr.bf16.mxu0 0
    %532 = vmatpush1.bf16.msra.mxu0 %v526
    %533 = vmatprep.subr.bf16.mxu0 0
    %534 = vmatpush1.bf16.msra.mxu0 0
    %535 = vmatprep.subr.bf16.mxu0 0
    %536 = vmatpush1.bf16.msra.mxu0 0
    %537 = vmatprep.subr.bf16.mxu0 0
    %538 = vmatpush1.bf16.msra.mxu0 0
    %539 = vmatprep.subr.bf16.mxu0 0
    %540 = vmatpush1.bf16.msra.mxu0 0
    %541 = vmatprep.subr.bf16.mxu0 0
    %542 = vmatpush1.bf16.msra.mxu0 0
    %543 = vmatprep.subr.bf16.mxu0 0
    %544 = vmatpush1.bf16.msra.mxu0 0
    %545 = vmatprep.subr.bf16.mxu0 0
    %546 = vmatpush1.bf16.msra.mxu0 0
    %547 = vmatprep.subr.bf16.mxu0 0
    %548 = vmatpush1.bf16.msra.mxu0 0
    %549 = vmatprep.subr.bf16.mxu0 0
    %550 = vmatpush1.bf16.msra.mxu0 0
    %551 = vmatprep.subr.bf16.mxu0 0
    %552 = vmatpush1.bf16.msra.mxu0 0
    %553 = vmatprep.subr.bf16.mxu0 0
    %554 = vmatpush1.bf16.msra.mxu0 0
    %555 = vmatprep.subr.bf16.mxu0 0
    %556 = vmatpush1.bf16.msra.mxu0 0
    %557 = vmatprep.subr.bf16.mxu0 0
    %558 = vmatpush1.bf16.msra.mxu0 0
    %559 = vmatprep.subr.bf16.mxu0 0
    %560 = vmatpush1.bf16.msra.mxu0 0
    %561 = vmatprep.mubr.bf16.mxu0 0
    %562 = vmatmul.mubr.bf16.gmra.mrb[0].mxu0 %v462
    %v563 = vpop.f32.mrb[0].mxu0
    %v564 = vadd.f32 %v515, %v563
    %v565 = vpop.f32.mrb[0].mxu0
    %v566 = vpop.f32.mrb[0].mxu0
    %v567 = vadd.f32 %v515, %v566
    %v568 = vpop.f32.mrb[0].mxu0
    %569 = vdwg.mxu0
    %v570 = vpack.c.bf16 %v567, %v564
    %v572 = vsel %vm392, %v437, 0
    %v575 = vsel %vm392, %v505, 0
    %577 = vmatprep.subr.bf16.mxu0 0
    %578 = vmatpush1.bf16.xpose.msra.mxu0 %v575
    %579 = vmatprep.subr.bf16.mxu0 0
    %580 = vmatpush1.bf16.xpose.msra.mxu0 0
    %581 = vmatprep.subr.bf16.mxu0 0
    %582 = vmatpush1.bf16.xpose.msra.mxu0 0
    %583 = vmatprep.subr.bf16.mxu0 0
    %584 = vmatpush1.bf16.xpose.msra.mxu0 0
    %585 = vmatprep.subr.bf16.mxu0 0
    %586 = vmatpush1.bf16.xpose.msra.mxu0 0
    %587 = vmatprep.subr.bf16.mxu0 0
    %588 = vmatpush1.bf16.xpose.msra.mxu0 0
    %589 = vmatprep.subr.bf16.mxu0 0
    %590 = vmatpush1.bf16.xpose.msra.mxu0 0
    %591 = vmatprep.subr.bf16.mxu0 0
    %592 = vmatpush1.bf16.xpose.msra.mxu0 0
    %593 = vmatprep.subr.bf16.mxu0 0
    %594 = vmatpush1.bf16.xpose.msra.mxu0 0
    %595 = vmatprep.subr.bf16.mxu0 0
    %596 = vmatpush1.bf16.xpose.msra.mxu0 0
    %597 = vmatprep.subr.bf16.mxu0 0
    %598 = vmatpush1.bf16.xpose.msra.mxu0 0
    %599 = vmatprep.subr.bf16.mxu0 0
    %600 = vmatpush1.bf16.xpose.msra.mxu0 0
    %601 = vmatprep.subr.bf16.mxu0 0
    %602 = vmatpush1.bf16.xpose.msra.mxu0 0
    %603 = vmatprep.subr.bf16.mxu0 0
    %604 = vmatpush1.bf16.xpose.msra.mxu0 0
    %605 = vmatprep.subr.bf16.mxu0 0
    %606 = vmatpush1.bf16.xpose.msra.mxu0 0
    %607 = vmatprep.subr.bf16.mxu0 0
    %608 = vmatpush1.bf16.xpose.msra.mxu0 0
    %609 = vmatprep.mubr.bf16.mxu0 0
    %610 = vmatmul.mubr.bf16.gmra.mrb[0].mxu0 %v572
    %v611 = vpop.f32.mrb[0].mxu0
    %v612 = vadd.f32 %v361, %v611
    %v613 = vpop.f32.mrb[0].mxu0
    %v614 = vpop.f32.mrb[0].mxu0
    %v615 = vadd.f32 %v362, %v614
    %v616 = vpop.f32.mrb[0].mxu0
    %617 = vdwg.mxu0
    %v618 = vld [vmem:[%s57] sm:$0xf]
    %v619 = vld [vmem:[%s57 + $0x4] sm:$0xf]
    %v620 = vld [vmem:[%s57 + $0x8] sm:$0xf]
    %v621 = vld [vmem:[%s57 + $0xc] sm:$0xf]
    %v622 = vld [vmem:[%s59] sm:$0x1]
    %v624 = vlaneseq
    %v625 = vshrl.u32 %v624, 7
    %v626 = vsub.s32 0, %v625
    %v627 = vrot.slane %v622, %v626
    %v633 = vunpack.c.l.b16 %v618
    %v634 = vunpack.c.l.b16 %v619
    %v635 = vunpack.c.l.b16 %v620
    %v636 = vunpack.c.l.b16 %v621
    %v637 = vpack.c.b16 %v634, %v633
    %v638 = vpack.c.b16 %v636, %v635
    %641 = vmatprep.subr.bf16.mxu0 0
    %642 = vmatpush1.bf16.msra.mxu0 %v637
    %643 = vmatprep.subr.bf16.mxu0 0
    %644 = vmatpush1.bf16.msra.mxu0 %v638
    %645 = vmatprep.subr.bf16.mxu0 0
    %646 = vmatpush1.bf16.msra.mxu0 0
    %647 = vmatprep.subr.bf16.mxu0 0
    %648 = vmatpush1.bf16.msra.mxu0 0
    %649 = vmatprep.subr.bf16.mxu0 0
    %650 = vmatpush1.bf16.msra.mxu0 0
    %651 = vmatprep.subr.bf16.mxu0 0
    %652 = vmatpush1.bf16.msra.mxu0 0
    %653 = vmatprep.subr.bf16.mxu0 0
    %654 = vmatpush1.bf16.msra.mxu0 0
    %655 = vmatprep.subr.bf16.mxu0 0
    %656 = vmatpush1.bf16.msra.mxu0 0
    %657 = vmatprep.subr.bf16.mxu0 0
    %658 = vmatpush1.bf16.msra.mxu0 0
    %659 = vmatprep.subr.bf16.mxu0 0
    %660 = vmatpush1.bf16.msra.mxu0 0
    %661 = vmatprep.subr.bf16.mxu0 0
    %662 = vmatpush1.bf16.msra.mxu0 0
    %663 = vmatprep.subr.bf16.mxu0 0
    %664 = vmatpush1.bf16.msra.mxu0 0
    %665 = vmatprep.subr.bf16.mxu0 0
    %666 = vmatpush1.bf16.msra.mxu0 0
    %667 = vmatprep.subr.bf16.mxu0 0
    %668 = vmatpush1.bf16.msra.mxu0 0
    %669 = vmatprep.subr.bf16.mxu0 0
    %670 = vmatpush1.bf16.msra.mxu0 0
    %671 = vmatprep.subr.bf16.mxu0 0
    %672 = vmatpush1.bf16.msra.mxu0 0
    %673 = vmatprep.mubr.bf16.mxu0 0
    %674 = vmatmul.mubr.bf16.gmra.mrb[0].mxu0 %v462
    %v675 = vpop.f32.mrb[0].mxu0
    %v676 = vadd.f32 %v627, %v675
    %v677 = vpop.f32.mrb[0].mxu0
    %v678 = vpop.f32.mrb[0].mxu0
    %v679 = vadd.f32 %v627, %v678
    %v680 = vpop.f32.mrb[0].mxu0
    %681 = vdwg.mxu0
    %v682 = vpack.c.bf16 %v679, %v676
    %v683 = vld [vmem:[%s61] sm:$0xf]
    %v684 = vld [vmem:[%s61 + $0x4] sm:$0xf]
    %v685 = vld [vmem:[%s61 + $0x8] sm:$0xf]
    %v686 = vld [vmem:[%s61 + $0xc] sm:$0xf]
    %v687 = vld [vmem:[%s63] sm:$0x1]
    %v689 = vlaneseq
    %v690 = vshrl.u32 %v689, 7
    %v691 = vsub.s32 0, %v690
    %v692 = vrot.slane %v687, %v691
    %v698 = vunpack.c.l.b16 %v683
    %v699 = vunpack.c.l.b16 %v684
    %v700 = vunpack.c.l.b16 %v685
    %v701 = vunpack.c.l.b16 %v686
    %v702 = vpack.c.b16 %v699, %v698
    %v703 = vpack.c.b16 %v701, %v700
    %706 = vmatprep.subr.bf16.mxu0 0
    %707 = vmatpush1.bf16.msra.mxu0 %v702
    %708 = vmatprep.subr.bf16.mxu0 0
    %709 = vmatpush1.bf16.msra.mxu0 %v703
    %710 = vmatprep.subr.bf16.mxu0 0
    %711 = vmatpush1.bf16.msra.mxu0 0
    %712 = vmatprep.subr.bf16.mxu0 0
    %713 = vmatpush1.bf16.msra.mxu0 0
    %714 = vmatprep.subr.bf16.mxu0 0
    %715 = vmatpush1.bf16.msra.mxu0 0
    %716 = vmatprep.subr.bf16.mxu0 0
    %717 = vmatpush1.bf16.msra.mxu0 0
    %718 = vmatprep.subr.bf16.mxu0 0
    %719 = vmatpush1.bf16.msra.mxu0 0
    %720 = vmatprep.subr.bf16.mxu0 0
    %721 = vmatpush1.bf16.msra.mxu0 0
    %722 = vmatprep.subr.bf16.mxu0 0
    %723 = vmatpush1.bf16.msra.mxu0 0
    %724 = vmatprep.subr.bf16.mxu0 0
    %725 = vmatpush1.bf16.msra.mxu0 0
    %726 = vmatprep.subr.bf16.mxu0 0
    %727 = vmatpush1.bf16.msra.mxu0 0
    %728 = vmatprep.subr.bf16.mxu0 0
    %729 = vmatpush1.bf16.msra.mxu0 0
    %730 = vmatprep.subr.bf16.mxu0 0
    %731 = vmatpush1.bf16.msra.mxu0 0
    %732 = vmatprep.subr.bf16.mxu0 0
    %733 = vmatpush1.bf16.msra.mxu0 0
    %734 = vmatprep.subr.bf16.mxu0 0
    %735 = vmatpush1.bf16.msra.mxu0 0
    %736 = vmatprep.subr.bf16.mxu0 0
    %737 = vmatpush1.bf16.msra.mxu0 0
    %738 = vmatprep.mubr.bf16.mxu0 0
    %739 = vmatmul.mubr.bf16.gmra.mrb[0].mxu0 %v462
    %v740 = vpop.f32.mrb[0].mxu0
    %v741 = vadd.f32 %v692, %v740
    %v742 = vpop.f32.mrb[0].mxu0
    %v743 = vpop.f32.mrb[0].mxu0
    %v744 = vadd.f32 %v692, %v743
    %v745 = vpop.f32.mrb[0].mxu0
    %746 = vdwg.mxu0
    %v747 = vpack.c.bf16 %v744, %v741
    %v749 = vsel %vm392, %v682, 0
    %751 = vmatprep.subr.bf16.mxu0 0
    %752 = vmatpush1.bf16.xpose.msra.mxu0 %v749
    %753 = vmatprep.subr.bf16.mxu0 0
    %754 = vmatpush1.bf16.xpose.msra.mxu0 0
    %755 = vmatprep.subr.bf16.mxu0 0
    %756 = vmatpush1.bf16.xpose.msra.mxu0 0
    %757 = vmatprep.subr.bf16.mxu0 0
    %758 = vmatpush1.bf16.xpose.msra.mxu0 0
    %759 = vmatprep.subr.bf16.mxu0 0
    %760 = vmatpush1.bf16.xpose.msra.mxu0 0
    %761 = vmatprep.subr.bf16.mxu0 0
    %762 = vmatpush1.bf16.xpose.msra.mxu0 0
    %763 = vmatprep.subr.bf16.mxu0 0
    %764 = vmatpush1.bf16.xpose.msra.mxu0 0
    %765 = vmatprep.subr.bf16.mxu0 0
    %766 = vmatpush1.bf16.xpose.msra.mxu0 0
    %767 = vmatprep.subr.bf16.mxu0 0
    %768 = vmatpush1.bf16.xpose.msra.mxu0 0
    %769 = vmatprep.subr.bf16.mxu0 0
    %770 = vmatpush1.bf16.xpose.msra.mxu0 0
    %771 = vmatprep.subr.bf16.mxu0 0
    %772 = vmatpush1.bf16.xpose.msra.mxu0 0
    %773 = vmatprep.subr.bf16.mxu0 0
    %774 = vmatpush1.bf16.xpose.msra.mxu0 0
    %775 = vmatprep.subr.bf16.mxu0 0
    %776 = vmatpush1.bf16.xpose.msra.mxu0 0
    %777 = vmatprep.subr.bf16.mxu0 0
    %778 = vmatpush1.bf16.xpose.msra.mxu0 0
    %779 = vmatprep.subr.bf16.mxu0 0
    %780 = vmatpush1.bf16.xpose.msra.mxu0 0
    %781 = vmatprep.subr.bf16.mxu0 0
    %782 = vmatpush1.bf16.xpose.msra.mxu0 0
    %783 = vmatprep.mubr.bf16.mxu0 0
    %784 = vmatmul.mubr.bf16.gmra.mrb[0].mxu0 %v572
    %v785 = vpop.f32.mrb[0].mxu0
    %v786 = vadd.f32 %v361, %v785
    %v787 = vpop.f32.mrb[0].mxu0
    %v788 = vpop.f32.mrb[0].mxu0
    %v789 = vadd.f32 %v362, %v788
    %v790 = vpop.f32.mrb[0].mxu0
    %791 = vdwg.mxu0
    %v792 = vld [vmem:[%s65] sm:$0xf]
    %v793 = vld [vmem:[%s65 + $0x4] sm:$0xf]
    %v794 = vld [vmem:[%s65 + $0x8] sm:$0xf]
    %v795 = vld [vmem:[%s65 + $0xc] sm:$0xf]
    %v796 = vld [vmem:[%s67] sm:$0x1]
    %v798 = vlaneseq
    %v799 = vshrl.u32 %v798, 7
    %v800 = vsub.s32 0, %v799
    %v801 = vrot.slane %v796, %v800
    %v807 = vunpack.c.l.b16 %v792
    %v808 = vunpack.c.l.b16 %v793
    %v809 = vunpack.c.l.b16 %v794
    %v810 = vunpack.c.l.b16 %v795
    %v811 = vpack.c.b16 %v808, %v807
    %v812 = vpack.c.b16 %v810, %v809
    %815 = vmatprep.subr.bf16.mxu0 0
    %816 = vmatpush1.bf16.msra.mxu0 %v811
    %817 = vmatprep.subr.bf16.mxu0 0
    %818 = vmatpush1.bf16.msra.mxu0 %v812
    %819 = vmatprep.subr.bf16.mxu0 0
    %820 = vmatpush1.bf16.msra.mxu0 0
    %821 = vmatprep.subr.bf16.mxu0 0
    %822 = vmatpush1.bf16.msra.mxu0 0
    %823 = vmatprep.subr.bf16.mxu0 0
    %824 = vmatpush1.bf16.msra.mxu0 0
    %825 = vmatprep.subr.bf16.mxu0 0
    %826 = vmatpush1.bf16.msra.mxu0 0
    %827 = vmatprep.subr.bf16.mxu0 0
    %828 = vmatpush1.bf16.msra.mxu0 0
    %829 = vmatprep.subr.bf16.mxu0 0
    %830 = vmatpush1.bf16.msra.mxu0 0
    %831 = vmatprep.subr.bf16.mxu0 0
    %832 = vmatpush1.bf16.msra.mxu0 0
    %833 = vmatprep.subr.bf16.mxu0 0
    %834 = vmatpush1.bf16.msra.mxu0 0
    %835 = vmatprep.subr.bf16.mxu0 0
    %836 = vmatpush1.bf16.msra.mxu0 0
    %837 = vmatprep.subr.bf16.mxu0 0
    %838 = vmatpush1.bf16.msra.mxu0 0
    %839 = vmatprep.subr.bf16.mxu0 0
    %840 = vmatpush1.bf16.msra.mxu0 0
    %841 = vmatprep.subr.bf16.mxu0 0
    %842 = vmatpush1.bf16.msra.mxu0 0
    %843 = vmatprep.subr.bf16.mxu0 0
    %844 = vmatpush1.bf16.msra.mxu0 0
    %845 = vmatprep.subr.bf16.mxu0 0
    %846 = vmatpush1.bf16.msra.mxu0 0
    %847 = vmatprep.mubr.bf16.mxu0 0
    %848 = vmatmul.mubr.bf16.gmra.mrb[0].mxu0 %v394
    %v849 = vpop.f32.mrb[0].mxu0
    %v850 = vadd.f32 %v801, %v849
    %v851 = vpop.f32.mrb[0].mxu0
    %v852 = vpop.f32.mrb[0].mxu0
    %v853 = vadd.f32 %v801, %v852
    %v854 = vpop.f32.mrb[0].mxu0
    %855 = vdwg.mxu0
    %v856 = vpack.c.bf16 %v853, %v850
    %v857 = vld [vmem:[%s69] sm:$0xf]
    %v858 = vld [vmem:[%s69 + $0x4] sm:$0xf]
    %v859 = vld [vmem:[%s69 + $0x8] sm:$0xf]
    %v860 = vld [vmem:[%s69 + $0xc] sm:$0xf]
    %v861 = vld [vmem:[%s71] sm:$0x1]
    %v863 = vlaneseq
    %v864 = vshrl.u32 %v863, 7
    %v865 = vsub.s32 0, %v864
    %v866 = vrot.slane %v861, %v865
    %v872 = vunpack.c.l.b16 %v857
    %v873 = vunpack.c.l.b16 %v858
    %v874 = vunpack.c.l.b16 %v859
    %v875 = vunpack.c.l.b16 %v860
    %v876 = vpack.c.b16 %v873, %v872
    %v877 = vpack.c.b16 %v875, %v874
    %880 = vmatprep.subr.bf16.mxu0 0
    %881 = vmatpush1.bf16.msra.mxu0 %v876
    %882 = vmatprep.subr.bf16.mxu0 0
    %883 = vmatpush1.bf16.msra.mxu0 %v877
    %884 = vmatprep.subr.bf16.mxu0 0
    %885 = vmatpush1.bf16.msra.mxu0 0
    %886 = vmatprep.subr.bf16.mxu0 0
    %887 = vmatpush1.bf16.msra.mxu0 0
    %888 = vmatprep.subr.bf16.mxu0 0
    %889 = vmatpush1.bf16.msra.mxu0 0
    %890 = vmatprep.subr.bf16.mxu0 0
    %891 = vmatpush1.bf16.msra.mxu0 0
    %892 = vmatprep.subr.bf16.mxu0 0
    %893 = vmatpush1.bf16.msra.mxu0 0
    %894 = vmatprep.subr.bf16.mxu0 0
    %895 = vmatpush1.bf16.msra.mxu0 0
    %896 = vmatprep.subr.bf16.mxu0 0
    %897 = vmatpush1.bf16.msra.mxu0 0
    %898 = vmatprep.subr.bf16.mxu0 0
    %899 = vmatpush1.bf16.msra.mxu0 0
    %900 = vmatprep.subr.bf16.mxu0 0
    %901 = vmatpush1.bf16.msra.mxu0 0
    %902 = vmatprep.subr.bf16.mxu0 0
    %903 = vmatpush1.bf16.msra.mxu0 0
    %904 = vmatprep.subr.bf16.mxu0 0
    %905 = vmatpush1.bf16.msra.mxu0 0
    %906 = vmatprep.subr.bf16.mxu0 0
    %907 = vmatpush1.bf16.msra.mxu0 0
    %908 = vmatprep.subr.bf16.mxu0 0
    %909 = vmatpush1.bf16.msra.mxu0 0
    %910 = vmatprep.subr.bf16.mxu0 0
    %911 = vmatpush1.bf16.msra.mxu0 0
    %912 = vmatprep.mubr.bf16.mxu0 0
    %913 = vmatmul.mubr.bf16.gmra.mrb[0].mxu0 %v394
    %v914 = vpop.f32.mrb[0].mxu0
    %v915 = vadd.f32 %v866, %v914
    %v916 = vpop.f32.mrb[0].mxu0
    %v917 = vpop.f32.mrb[0].mxu0
    %v918 = vadd.f32 %v866, %v917
    %v919 = vpop.f32.mrb[0].mxu0
    %920 = vdwg.mxu0
    %v921 = vpack.c.bf16 %v918, %v915
    %v923 = vsel %vm392, %v856, 0
    %925 = vmatprep.subr.bf16.mxu0 0
    %926 = vmatpush1.bf16.xpose.msra.mxu0 %v923
    %927 = vmatprep.subr.bf16.mxu0 0
    %928 = vmatpush1.bf16.xpose.msra.mxu0 0
    %929 = vmatprep.subr.bf16.mxu0 0
    %930 = vmatpush1.bf16.xpose.msra.mxu0 0
    %931 = vmatprep.subr.bf16.mxu0 0
    %932 = vmatpush1.bf16.xpose.msra.mxu0 0
    %933 = vmatprep.subr.bf16.mxu0 0
    %934 = vmatpush1.bf16.xpose.msra.mxu0 0
    %935 = vmatprep.subr.bf16.mxu0 0
    %936 = vmatpush1.bf16.xpose.msra.mxu0 0
    %937 = vmatprep.subr.bf16.mxu0 0
    %938 = vmatpush1.bf16.xpose.msra.mxu0 0
    %939 = vmatprep.subr.bf16.mxu0 0
    %940 = vmatpush1.bf16.xpose.msra.mxu0 0
    %941 = vmatprep.subr.bf16.mxu0 0
    %942 = vmatpush1.bf16.xpose.msra.mxu0 0
    %943 = vmatprep.subr.bf16.mxu0 0
    %944 = vmatpush1.bf16.xpose.msra.mxu0 0
    %945 = vmatprep.subr.bf16.mxu0 0
    %946 = vmatpush1.bf16.xpose.msra.mxu0 0
    %947 = vmatprep.subr.bf16.mxu0 0
    %948 = vmatpush1.bf16.xpose.msra.mxu0 0
    %949 = vmatprep.subr.bf16.mxu0 0
    %950 = vmatpush1.bf16.xpose.msra.mxu0 0
    %951 = vmatprep.subr.bf16.mxu0 0
    %952 = vmatpush1.bf16.xpose.msra.mxu0 0
    %953 = vmatprep.subr.bf16.mxu0 0
    %954 = vmatpush1.bf16.xpose.msra.mxu0 0
    %955 = vmatprep.subr.bf16.mxu0 0
    %956 = vmatpush1.bf16.xpose.msra.mxu0 0
    %957 = vmatprep.mubr.bf16.mxu0 0
    %958 = vmatmul.mubr.bf16.gmra.mrb[0].mxu0 %v572
    %v959 = vpop.f32.mrb[0].mxu0
    %v960 = vadd.f32 %v365, %v959
    %v961 = vpop.f32.mrb[0].mxu0
    %v962 = vpop.f32.mrb[0].mxu0
    %v963 = vadd.f32 %v366, %v962
    %v964 = vpop.f32.mrb[0].mxu0
    %965 = vdwg.mxu0
    %v966 = vld [vmem:[%s73] sm:$0xf]
    %v967 = vld [vmem:[%s73 + $0x4] sm:$0xf]
    %v968 = vld [vmem:[%s73 + $0x8] sm:$0xf]
    %v969 = vld [vmem:[%s73 + $0xc] sm:$0xf]
    %v970 = vld [vmem:[%s75] sm:$0x1]
    %v972 = vlaneseq
    %v973 = vshrl.u32 %v972, 7
    %v974 = vsub.s32 0, %v973
    %v975 = vrot.slane %v970, %v974
    %v981 = vunpack.c.l.b16 %v966
    %v982 = vunpack.c.l.b16 %v967
    %v983 = vunpack.c.l.b16 %v968
    %v984 = vunpack.c.l.b16 %v969
    %v985 = vpack.c.b16 %v982, %v981
    %v986 = vpack.c.b16 %v984, %v983
    %989 = vmatprep.subr.bf16.mxu0 0
    %990 = vmatpush1.bf16.msra.mxu0 %v985
    %991 = vmatprep.subr.bf16.mxu0 0
    %992 = vmatpush1.bf16.msra.mxu0 %v986
    %993 = vmatprep.subr.bf16.mxu0 0
    %994 = vmatpush1.bf16.msra.mxu0 0
    %995 = vmatprep.subr.bf16.mxu0 0
    %996 = vmatpush1.bf16.msra.mxu0 0
    %997 = vmatprep.subr.bf16.mxu0 0
    %998 = vmatpush1.bf16.msra.mxu0 0
    %999 = vmatprep.subr.bf16.mxu0 0
    %1000 = vmatpush1.bf16.msra.mxu0 0
    %1001 = vmatprep.subr.bf16.mxu0 0
    %1002 = vmatpush1.bf16.msra.mxu0 0
    %1003 = vmatprep.subr.bf16.mxu0 0
    %1004 = vmatpush1.bf16.msra.mxu0 0
    %1005 = vmatprep.subr.bf16.mxu0 0
    %1006 = vmatpush1.bf16.msra.mxu0 0
    %1007 = vmatprep.subr.bf16.mxu0 0
    %1008 = vmatpush1.bf16.msra.mxu0 0
    %1009 = vmatprep.subr.bf16.mxu0 0
    %1010 = vmatpush1.bf16.msra.mxu0 0
    %1011 = vmatprep.subr.bf16.mxu0 0
    %1012 = vmatpush1.bf16.msra.mxu0 0
    %1013 = vmatprep.subr.bf16.mxu0 0
    %1014 = vmatpush1.bf16.msra.mxu0 0
    %1015 = vmatprep.subr.bf16.mxu0 0
    %1016 = vmatpush1.bf16.msra.mxu0 0
    %1017 = vmatprep.subr.bf16.mxu0 0
    %1018 = vmatpush1.bf16.msra.mxu0 0
    %1019 = vmatprep.subr.bf16.mxu0 0
    %1020 = vmatpush1.bf16.msra.mxu0 0
    %1021 = vmatprep.mubr.bf16.mxu0 0
    %1022 = vmatmul.mubr.bf16.gmra.mrb[0].mxu0 %v394
    %v1023 = vpop.f32.mrb[0].mxu0
    %v1024 = vadd.f32 %v975, %v1023
    %v1025 = vpop.f32.mrb[0].mxu0
    %v1026 = vpop.f32.mrb[0].mxu0
    %v1027 = vadd.f32 %v975, %v1026
    %v1028 = vpop.f32.mrb[0].mxu0
    %1029 = vdwg.mxu0
    %v1030 = vpack.c.bf16 %v1027, %v1024
    %v1031 = vld [vmem:[%s77] sm:$0xf]
    %v1032 = vld [vmem:[%s77 + $0x4] sm:$0xf]
    %v1033 = vld [vmem:[%s77 + $0x8] sm:$0xf]
    %v1034 = vld [vmem:[%s77 + $0xc] sm:$0xf]
    %v1035 = vld [vmem:[%s79] sm:$0x1]
    %v1037 = vlaneseq
    %v1038 = vshrl.u32 %v1037, 7
    %v1039 = vsub.s32 0, %v1038
    %v1040 = vrot.slane %v1035, %v1039
    %v1046 = vunpack.c.l.b16 %v1031
    %v1047 = vunpack.c.l.b16 %v1032
    %v1048 = vunpack.c.l.b16 %v1033
    %v1049 = vunpack.c.l.b16 %v1034
    %v1050 = vpack.c.b16 %v1047, %v1046
    %v1051 = vpack.c.b16 %v1049, %v1048
    %1054 = vmatprep.subr.bf16.mxu0 0
    %1055 = vmatpush1.bf16.msra.mxu0 %v1050
    %1056 = vmatprep.subr.bf16.mxu0 0
    %1057 = vmatpush1.bf16.msra.mxu0 %v1051
    %1058 = vmatprep.subr.bf16.mxu0 0
    %1059 = vmatpush1.bf16.msra.mxu0 0
    %1060 = vmatprep.subr.bf16.mxu0 0
    %1061 = vmatpush1.bf16.msra.mxu0 0
    %1062 = vmatprep.subr.bf16.mxu0 0
    %1063 = vmatpush1.bf16.msra.mxu0 0
    %1064 = vmatprep.subr.bf16.mxu0 0
    %1065 = vmatpush1.bf16.msra.mxu0 0
    %1066 = vmatprep.subr.bf16.mxu0 0
    %1067 = vmatpush1.bf16.msra.mxu0 0
    %1068 = vmatprep.subr.bf16.mxu0 0
    %1069 = vmatpush1.bf16.msra.mxu0 0
    %1070 = vmatprep.subr.bf16.mxu0 0
    %1071 = vmatpush1.bf16.msra.mxu0 0
    %1072 = vmatprep.subr.bf16.mxu0 0
    %1073 = vmatpush1.bf16.msra.mxu0 0
    %1074 = vmatprep.subr.bf16.mxu0 0
    %1075 = vmatpush1.bf16.msra.mxu0 0
    %1076 = vmatprep.subr.bf16.mxu0 0
    %1077 = vmatpush1.bf16.msra.mxu0 0
    %1078 = vmatprep.subr.bf16.mxu0 0
    %1079 = vmatpush1.bf16.msra.mxu0 0
    %1080 = vmatprep.subr.bf16.mxu0 0
    %1081 = vmatpush1.bf16.msra.mxu0 0
    %1082 = vmatprep.subr.bf16.mxu0 0
    %1083 = vmatpush1.bf16.msra.mxu0 0
    %1084 = vmatprep.subr.bf16.mxu0 0
    %1085 = vmatpush1.bf16.msra.mxu0 0
    %1086 = vmatprep.mubr.bf16.mxu0 0
    %1087 = vmatmul.mubr.bf16.gmra.mrb[0].mxu0 %v394
    %v1088 = vpop.f32.mrb[0].mxu0
    %v1089 = vadd.f32 %v1040, %v1088
    %v1090 = vpop.f32.mrb[0].mxu0
    %v1091 = vpop.f32.mrb[0].mxu0
    %v1092 = vadd.f32 %v1040, %v1091
    %v1093 = vpop.f32.mrb[0].mxu0
    %1094 = vdwg.mxu0
    %v1095 = vpack.c.bf16 %v1092, %v1089
    %v1097 = vsel %vm392, %v1030, 0
    %1099 = vmatprep.subr.bf16.mxu0 0
    %1100 = vmatpush1.bf16.xpose.msra.mxu0 %v1097
    %1101 = vmatprep.subr.bf16.mxu0 0
    %1102 = vmatpush1.bf16.xpose.msra.mxu0 0
    %1103 = vmatprep.subr.bf16.mxu0 0
    %1104 = vmatpush1.bf16.xpose.msra.mxu0 0
    %1105 = vmatprep.subr.bf16.mxu0 0
    %1106 = vmatpush1.bf16.xpose.msra.mxu0 0
    %1107 = vmatprep.subr.bf16.mxu0 0
    %1108 = vmatpush1.bf16.xpose.msra.mxu0 0
    %1109 = vmatprep.subr.bf16.mxu0 0
    %1110 = vmatpush1.bf16.xpose.msra.mxu0 0
    %1111 = vmatprep.subr.bf16.mxu0 0
    %1112 = vmatpush1.bf16.xpose.msra.mxu0 0
    %1113 = vmatprep.subr.bf16.mxu0 0
    %1114 = vmatpush1.bf16.xpose.msra.mxu0 0
    %1115 = vmatprep.subr.bf16.mxu0 0
    %1116 = vmatpush1.bf16.xpose.msra.mxu0 0
    %1117 = vmatprep.subr.bf16.mxu0 0
    %1118 = vmatpush1.bf16.xpose.msra.mxu0 0
    %1119 = vmatprep.subr.bf16.mxu0 0
    %1120 = vmatpush1.bf16.xpose.msra.mxu0 0
    %1121 = vmatprep.subr.bf16.mxu0 0
    %1122 = vmatpush1.bf16.xpose.msra.mxu0 0
    %1123 = vmatprep.subr.bf16.mxu0 0
    %1124 = vmatpush1.bf16.xpose.msra.mxu0 0
    %1125 = vmatprep.subr.bf16.mxu0 0
    %1126 = vmatpush1.bf16.xpose.msra.mxu0 0
    %1127 = vmatprep.subr.bf16.mxu0 0
    %1128 = vmatpush1.bf16.xpose.msra.mxu0 0
    %1129 = vmatprep.subr.bf16.mxu0 0
    %1130 = vmatpush1.bf16.xpose.msra.mxu0 0
    %1131 = vmatprep.mubr.bf16.mxu0 0
    %1132 = vmatmul.mubr.bf16.gmra.mrb[0].mxu0 %v572
    %v1133 = vpop.f32.mrb[0].mxu0
    %v1134 = vadd.f32 %v365, %v1133
    %v1135 = vpop.f32.mrb[0].mxu0
    %v1136 = vpop.f32.mrb[0].mxu0
    %v1137 = vadd.f32 %v366, %v1136
    %v1138 = vpop.f32.mrb[0].mxu0
    %1139 = vdwg.mxu0
    %vm1140 = vcmask 97280
    %v1141 = vsel %vm1140, %v612, -inf
    %1142 = vmax.xlane.f32.xlu0 %v1141
    %v1143 = vpop.xlane.xlu0 %1142
    %v1144 = vsel %vm1140, %v615, -inf
    %1145 = vmax.xlane.f32.xlu0 %v1144
    %v1146 = vpop.xlane.xlu0 %1145
    %v1147 = vmax.f32 %v1143, -1e+30
    %v1148 = vmax.f32 %v1146, -1e+30
    %v1149 = vsel %vm312, %v960, -inf
    %1150 = vmax.xlane.f32.xlu0 %v1149
    %v1151 = vpop.xlane.xlu0 %1150
    %v1152 = vsel %vm312, %v963, -inf
    %1153 = vmax.xlane.f32.xlu0 %v1152
    %v1154 = vpop.xlane.xlu0 %1153
    %v1155 = vmax.f32 %v1147, %v1151
    %v1156 = vmax.f32 %v1148, %v1154
    %v1157 = vsub.f32 %v612, %v1155
    %v1158 = vsub.f32 %v615, %v1156
    %v1159 = vmul.f32 %v1157, 1.442695
    %v1160 = vpow.pop %v1159
    %v1161 = vmul.f32 %v1158, 1.442695
    %v1162 = vpow.pop %v1161
    %v1163 = vsel %vm1140, %v1160, 0.0
    %1164 = vadd.xlane.f32.xlu0 %v1163
    %v1165 = vpop.xlane.xlu0 %1164
    %v1166 = vsel %vm1140, %v1162, 0.0
    %1167 = vadd.xlane.f32.xlu0 %v1166
    %v1168 = vpop.xlane.xlu0 %1167
    %v1169 = vadd.f32 %v1165, 0.0
    %v1170 = vadd.f32 %v1168, 0.0
    %v1171 = vpack.c.bf16 %v1162, %v1160
    %v1172 = vsub.f32 %v960, %v1155
    %v1173 = vsub.f32 %v963, %v1156
    %v1174 = vmul.f32 %v1172, 1.442695
    %v1175 = vpow.pop %v1174
    %v1176 = vmul.f32 %v1173, 1.442695
    %v1177 = vpow.pop %v1176
    %v1178 = vsel %vm312, %v1175, 0.0
    %1179 = vadd.xlane.f32.xlu0 %v1178
    %v1180 = vpop.xlane.xlu0 %1179
    %v1181 = vsel %vm312, %v1177, 0.0
    %1182 = vadd.xlane.f32.xlu0 %v1181
    %v1183 = vpop.xlane.xlu0 %1182
    %v1184 = vadd.f32 %v1169, %v1180
    %v1185 = vadd.f32 %v1170, %v1183
    %v1186 = vpack.c.bf16 %v1177, %v1175
    %v1188 = vsel %vm312, %v1186, 0
    %1190 = vmatprep.subr.bf16.mxu0 0
    %1191 = vmatpush1.bf16.msra.mxu0 %v921
    %1192 = vmatprep.subr.bf16.mxu0 0
    %1193 = vmatpush1.bf16.msra.mxu0 0
    %1194 = vmatprep.subr.bf16.mxu0 0
    %1195 = vmatpush1.bf16.msra.mxu0 0
    %1196 = vmatprep.subr.bf16.mxu0 0
    %1197 = vmatpush1.bf16.msra.mxu0 0
    %1198 = vmatprep.subr.bf16.mxu0 0
    %1199 = vmatpush1.bf16.msra.mxu0 0
    %1200 = vmatprep.subr.bf16.mxu0 0
    %1201 = vmatpush1.bf16.msra.mxu0 0
    %1202 = vmatprep.subr.bf16.mxu0 0
    %1203 = vmatpush1.bf16.msra.mxu0 0
    %1204 = vmatprep.subr.bf16.mxu0 0
    %1205 = vmatpush1.bf16.msra.mxu0 0
    %1206 = vmatprep.subr.bf16.mxu0 0
    %1207 = vmatpush1.bf16.msra.mxu0 0
    %1208 = vmatprep.subr.bf16.mxu0 0
    %1209 = vmatpush1.bf16.msra.mxu0 0
    %1210 = vmatprep.subr.bf16.mxu0 0
    %1211 = vmatpush1.bf16.msra.mxu0 0
    %1212 = vmatprep.subr.bf16.mxu0 0
    %1213 = vmatpush1.bf16.msra.mxu0 0
    %1214 = vmatprep.subr.bf16.mxu0 0
    %1215 = vmatpush1.bf16.msra.mxu0 0
    %1216 = vmatprep.subr.bf16.mxu0 0
    %1217 = vmatpush1.bf16.msra.mxu0 0
    %1218 = vmatprep.subr.bf16.mxu0 0
    %1219 = vmatpush1.bf16.msra.mxu0 0
    %1220 = vmatprep.subr.bf16.mxu0 0
    %1221 = vmatpush1.bf16.msra.mxu0 0
    %1222 = vmatprep.mubr.bf16.mxu0 0
    %1223 = vmatmul.mubr.bf16.gmra.mrb[0].mxu0 %v1188
    %v1224 = vpop.f32.mrb[0].mxu0
    %v1225 = vadd.f32 0.0, %v1224
    %v1226 = vpop.f32.mrb[0].mxu0
    %v1227 = vpop.f32.mrb[0].mxu0
    %v1228 = vadd.f32 0.0, %v1227
    %v1229 = vpop.f32.mrb[0].mxu0
    %1230 = vdwg.mxu0
    %v1232 = vsel %vm1140, %v1171, 0
    %vm1234 = vcmask 1045504
    %v1236 = vsel %vm1234, %v570, 0
    %1238 = vmatprep.subr.bf16.mxu0 0
    %1239 = vmatpush1.bf16.msra.mxu0 %v1236
    %1240 = vmatprep.subr.bf16.mxu0 0
    %1241 = vmatpush1.bf16.msra.mxu0 0
    %1242 = vmatprep.subr.bf16.mxu0 0
    %1243 = vmatpush1.bf16.msra.mxu0 0
    %1244 = vmatprep.subr.bf16.mxu0 0
    %1245 = vmatpush1.bf16.msra.mxu0 0
    %1246 = vmatprep.subr.bf16.mxu0 0
    %1247 = vmatpush1.bf16.msra.mxu0 0
    %1248 = vmatprep.subr.bf16.mxu0 0
    %1249 = vmatpush1.bf16.msra.mxu0 0
    %1250 = vmatprep.subr.bf16.mxu0 0
    %1251 = vmatpush1.bf16.msra.mxu0 0
    %1252 = vmatprep.subr.bf16.mxu0 0
    %1253 = vmatpush1.bf16.msra.mxu0 0
    %1254 = vmatprep.subr.bf16.mxu0 0
    %1255 = vmatpush1.bf16.msra.mxu0 0
    %1256 = vmatprep.subr.bf16.mxu0 0
    %1257 = vmatpush1.bf16.msra.mxu0 0
    %1258 = vmatprep.subr.bf16.mxu0 0
    %1259 = vmatpush1.bf16.msra.mxu0 0
    %1260 = vmatprep.subr.bf16.mxu0 0
    %1261 = vmatpush1.bf16.msra.mxu0 0
    %1262 = vmatprep.subr.bf16.mxu0 0
    %1263 = vmatpush1.bf16.msra.mxu0 0
    %1264 = vmatprep.subr.bf16.mxu0 0
    %1265 = vmatpush1.bf16.msra.mxu0 0
    %1266 = vmatprep.subr.bf16.mxu0 0
    %1267 = vmatpush1.bf16.msra.mxu0 0
    %1268 = vmatprep.subr.bf16.mxu0 0
    %1269 = vmatpush1.bf16.msra.mxu0 0
    %1270 = vmatprep.mubr.bf16.mxu0 0
    %1271 = vmatmul.mubr.bf16.gmra.mrb[0].mxu0 %v1232
    %v1272 = vpop.f32.mrb[0].mxu0
    %v1273 = vadd.f32 %v1225, %v1272
    %v1274 = vpop.f32.mrb[0].mxu0
    %v1275 = vpop.f32.mrb[0].mxu0
    %v1276 = vadd.f32 %v1228, %v1275
    %v1277 = vpop.f32.mrb[0].mxu0
    %1278 = vdwg.mxu0
    %v1279 = vmax.f32 %v1184, 1e-20
    %v1280 = vmax.f32 %v1185, 1e-20
    %v1281 = vrcp.pop %v1279
    %v1282 = vrcp.pop %v1280
    %v1283 = vmul.f32 %v1273, %v1281
    %v1284 = vmul.f32 %v1276, %v1282
    %v1285 = vadd.f32 %v1283, 0.0
    %v1286 = vadd.f32 %v1284, 0.0
    %v1287 = vsel %vm1140, %v786, -inf
    %1288 = vmax.xlane.f32.xlu0 %v1287
    %v1289 = vpop.xlane.xlu0 %1288
    %v1290 = vsel %vm1140, %v789, -inf
    %1291 = vmax.xlane.f32.xlu0 %v1290
    %v1292 = vpop.xlane.xlu0 %1291
    %v1293 = vmax.f32 %v1289, -1e+30
    %v1294 = vmax.f32 %v1292, -1e+30
    %v1295 = vsel %vm312, %v1134, -inf
    %1296 = vmax.xlane.f32.xlu0 %v1295
    %v1297 = vpop.xlane.xlu0 %1296
    %v1298 = vsel %vm312, %v1137, -inf
    %1299 = vmax.xlane.f32.xlu0 %v1298
    %v1300 = vpop.xlane.xlu0 %1299
    %v1301 = vmax.f32 %v1293, %v1297
    %v1302 = vmax.f32 %v1294, %v1300
    %v1303 = vsub.f32 %v786, %v1301
    %v1304 = vsub.f32 %v789, %v1302
    %v1305 = vmul.f32 %v1303, 1.442695
    %v1306 = vpow.pop %v1305
    %v1307 = vmul.f32 %v1304, 1.442695
    %v1308 = vpow.pop %v1307
    %v1309 = vsel %vm1140, %v1306, 0.0
    %1310 = vadd.xlane.f32.xlu0 %v1309
    %v1311 = vpop.xlane.xlu0 %1310
    %v1312 = vsel %vm1140, %v1308, 0.0
    %1313 = vadd.xlane.f32.xlu0 %v1312
    %v1314 = vpop.xlane.xlu0 %1313
    %v1315 = vadd.f32 %v1311, 0.0
    %v1316 = vadd.f32 %v1314, 0.0
    %v1317 = vpack.c.bf16 %v1308, %v1306
    %v1318 = vsub.f32 %v1134, %v1301
    %v1319 = vsub.f32 %v1137, %v1302
    %v1320 = vmul.f32 %v1318, 1.442695
    %v1321 = vpow.pop %v1320
    %v1322 = vmul.f32 %v1319, 1.442695
    %v1323 = vpow.pop %v1322
    %v1324 = vsel %vm312, %v1321, 0.0
    %1325 = vadd.xlane.f32.xlu0 %v1324
    %v1326 = vpop.xlane.xlu0 %1325
    %v1327 = vsel %vm312, %v1323, 0.0
    %1328 = vadd.xlane.f32.xlu0 %v1327
    %v1329 = vpop.xlane.xlu0 %1328
    %v1330 = vadd.f32 %v1315, %v1326
    %v1331 = vadd.f32 %v1316, %v1329
    %v1332 = vpack.c.bf16 %v1323, %v1321
    %v1334 = vsel %vm312, %v1332, 0
    %1336 = vmatprep.subr.bf16.mxu0 0
    %1337 = vmatpush1.bf16.msra.mxu0 %v1095
    %1338 = vmatprep.subr.bf16.mxu0 0
    %1339 = vmatpush1.bf16.msra.mxu0 0
    %1340 = vmatprep.subr.bf16.mxu0 0
    %1341 = vmatpush1.bf16.msra.mxu0 0
    %1342 = vmatprep.subr.bf16.mxu0 0
    %1343 = vmatpush1.bf16.msra.mxu0 0
    %1344 = vmatprep.subr.bf16.mxu0 0
    %1345 = vmatpush1.bf16.msra.mxu0 0
    %1346 = vmatprep.subr.bf16.mxu0 0
    %1347 = vmatpush1.bf16.msra.mxu0 0
    %1348 = vmatprep.subr.bf16.mxu0 0
    %1349 = vmatpush1.bf16.msra.mxu0 0
    %1350 = vmatprep.subr.bf16.mxu0 0
    %1351 = vmatpush1.bf16.msra.mxu0 0
    %1352 = vmatprep.subr.bf16.mxu0 0
    %1353 = vmatpush1.bf16.msra.mxu0 0
    %1354 = vmatprep.subr.bf16.mxu0 0
    %1355 = vmatpush1.bf16.msra.mxu0 0
    %1356 = vmatprep.subr.bf16.mxu0 0
    %1357 = vmatpush1.bf16.msra.mxu0 0
    %1358 = vmatprep.subr.bf16.mxu0 0
    %1359 = vmatpush1.bf16.msra.mxu0 0
    %1360 = vmatprep.subr.bf16.mxu0 0
    %1361 = vmatpush1.bf16.msra.mxu0 0
    %1362 = vmatprep.subr.bf16.mxu0 0
    %1363 = vmatpush1.bf16.msra.mxu0 0
    %1364 = vmatprep.subr.bf16.mxu0 0
    %1365 = vmatpush1.bf16.msra.mxu0 0
    %1366 = vmatprep.subr.bf16.mxu0 0
    %1367 = vmatpush1.bf16.msra.mxu0 0
    %1368 = vmatprep.mubr.bf16.mxu0 0
    %1369 = vmatmul.mubr.bf16.gmra.mrb[0].mxu0 %v1334
    %v1370 = vpop.f32.mrb[0].mxu0
    %v1371 = vadd.f32 0.0, %v1370
    %v1372 = vpop.f32.mrb[0].mxu0
    %v1373 = vpop.f32.mrb[0].mxu0
    %v1374 = vadd.f32 0.0, %v1373
    %v1375 = vpop.f32.mrb[0].mxu0
    %1376 = vdwg.mxu0
    %v1378 = vsel %vm1140, %v1317, 0
    %v1381 = vsel %vm1234, %v747, 0
    %1383 = vmatprep.subr.bf16.mxu0 0
    %1384 = vmatpush1.bf16.msra.mxu0 %v1381
    %1385 = vmatprep.subr.bf16.mxu0 0
    %1386 = vmatpush1.bf16.msra.mxu0 0
    %1387 = vmatprep.subr.bf16.mxu0 0
    %1388 = vmatpush1.bf16.msra.mxu0 0
    %1389 = vmatprep.subr.bf16.mxu0 0
    %1390 = vmatpush1.bf16.msra.mxu0 0
    %1391 = vmatprep.subr.bf16.mxu0 0
    %1392 = vmatpush1.bf16.msra.mxu0 0
    %1393 = vmatprep.subr.bf16.mxu0 0
    %1394 = vmatpush1.bf16.msra.mxu0 0
    %1395 = vmatprep.subr.bf16.mxu0 0
    %1396 = vmatpush1.bf16.msra.mxu0 0
    %1397 = vmatprep.subr.bf16.mxu0 0
    %1398 = vmatpush1.bf16.msra.mxu0 0
    %1399 = vmatprep.subr.bf16.mxu0 0
    %1400 = vmatpush1.bf16.msra.mxu0 0
    %1401 = vmatprep.subr.bf16.mxu0 0
    %1402 = vmatpush1.bf16.msra.mxu0 0
    %1403 = vmatprep.subr.bf16.mxu0 0
    %1404 = vmatpush1.bf16.msra.mxu0 0
    %1405 = vmatprep.subr.bf16.mxu0 0
    %1406 = vmatpush1.bf16.msra.mxu0 0
    %1407 = vmatprep.subr.bf16.mxu0 0
    %1408 = vmatpush1.bf16.msra.mxu0 0
    %1409 = vmatprep.subr.bf16.mxu0 0
    %1410 = vmatpush1.bf16.msra.mxu0 0
    %1411 = vmatprep.subr.bf16.mxu0 0
    %1412 = vmatpush1.bf16.msra.mxu0 0
    %1413 = vmatprep.subr.bf16.mxu0 0
    %1414 = vmatpush1.bf16.msra.mxu0 0
    %1415 = vmatprep.mubr.bf16.mxu0 0
    %1416 = vmatmul.mubr.bf16.gmra.mrb[0].mxu0 %v1378
    %v1417 = vpop.f32.mrb[0].mxu0
    %v1418 = vadd.f32 %v1371, %v1417
    %v1419 = vpop.f32.mrb[0].mxu0
    %v1420 = vpop.f32.mrb[0].mxu0
    %v1421 = vadd.f32 %v1374, %v1420
    %v1422 = vpop.f32.mrb[0].mxu0
    %1423 = vdwg.mxu0
    %v1424 = vmax.f32 %v1330, 1e-20
    %v1425 = vmax.f32 %v1331, 1e-20
    %v1426 = vrcp.pop %v1424
    %v1427 = vrcp.pop %v1425
    %v1428 = vmul.f32 %v1418, %v1426
    %v1429 = vmul.f32 %v1421, %v1427
    %v1430 = vadd.f32 %v1285, %v1428
    %v1431 = vadd.f32 %v1286, %v1429
    %v1432 = vld [vmem:[%s87] sm:$0xff]
    %v1433 = vld [vmem:[%s87 + $0x8] sm:$0xff]
    %1435 = vset.pattern.permute.xlu0 0
    %1436 = vperm.xlu0 %1435, %v1432
    %v1437 = vpop.permute.xlu0 %1436
    %1440 = vset.pattern.permute.xlu0 0
    %1441 = vperm.xlu0 %1440, %v1433
    %v1442 = vpop.permute.xlu0 %1441
    %v1444 = vmul.f32 %v1430, %v1437
    %v1445 = vmul.f32 %v1431, %v1442
    %v1446 = vmul.f32 %v1444, %v1444
    %v1447 = vmul.f32 %v1445, %v1445
    %v1448 = vmul.f32 %v1444, %v1446
    %v1449 = vmul.f32 %v1445, %v1447
    %v1450 = vmul.f32 %v1448, 0.044715
    %v1451 = vmul.f32 %v1449, 0.044715
    %v1452 = vadd.f32 %v1444, %v1450
    %v1453 = vadd.f32 %v1445, %v1451
    %v1454 = vmul.f32 %v1452, 0.7978846
    %v1455 = vmul.f32 %v1453, 0.7978846
    %v1456 = vtanh.pop %v1454
    %v1457 = vtanh.pop %v1455
    %v1458 = vadd.f32 %v1456, 1.0
    %v1459 = vadd.f32 %v1457, 1.0
    %v1460 = vmul.f32 %v1458, 0.5
    %v1461 = vmul.f32 %v1459, 0.5
    %v1462 = vmul.f32 %v1444, %v1460
    %v1463 = vmul.f32 %v1445, %v1461
    %v1464 = vpack.c.bf16 %v1463, %v1462
    %v1465 = vld [vmem:[%s17] sm:$0xf]
    %v1466 = vld [vmem:[%s17 + $0x4] sm:$0xf]
    %v1467 = vld [vmem:[%s17 + $0x8] sm:$0xf]
    %v1468 = vld [vmem:[%s17 + $0xc] sm:$0xf]
    %v1469 = vld [vmem:[%s19] sm:$0x1]
    %v1471 = vlaneseq
    %v1472 = vshrl.u32 %v1471, 7
    %v1473 = vsub.s32 0, %v1472
    %v1474 = vrot.slane %v1469, %v1473
    %v1480 = vunpack.c.l.b16 %v1465
    %v1481 = vunpack.c.l.b16 %v1466
    %v1482 = vunpack.c.l.b16 %v1467
    %v1483 = vunpack.c.l.b16 %v1468
    %v1484 = vpack.c.b16 %v1481, %v1480
    %v1485 = vpack.c.b16 %v1483, %v1482
    %v1489 = vsel %vm392, %v1464, 0
    %1491 = vmatprep.subr.bf16.mxu0 0
    %1492 = vmatpush1.bf16.msra.mxu0 %v1484
    %1493 = vmatprep.subr.bf16.mxu0 0
    %1494 = vmatpush1.bf16.msra.mxu0 %v1485
    %1495 = vmatprep.subr.bf16.mxu0 0
    %1496 = vmatpush1.bf16.msra.mxu0 0
    %1497 = vmatprep.subr.bf16.mxu0 0
    %1498 = vmatpush1.bf16.msra.mxu0 0
    %1499 = vmatprep.subr.bf16.mxu0 0
    %1500 = vmatpush1.bf16.msra.mxu0 0
    %1501 = vmatprep.subr.bf16.mxu0 0
    %1502 = vmatpush1.bf16.msra.mxu0 0
    %1503 = vmatprep.subr.bf16.mxu0 0
    %1504 = vmatpush1.bf16.msra.mxu0 0
    %1505 = vmatprep.subr.bf16.mxu0 0
    %1506 = vmatpush1.bf16.msra.mxu0 0
    %1507 = vmatprep.subr.bf16.mxu0 0
    %1508 = vmatpush1.bf16.msra.mxu0 0
    %1509 = vmatprep.subr.bf16.mxu0 0
    %1510 = vmatpush1.bf16.msra.mxu0 0
    %1511 = vmatprep.subr.bf16.mxu0 0
    %1512 = vmatpush1.bf16.msra.mxu0 0
    %1513 = vmatprep.subr.bf16.mxu0 0
    %1514 = vmatpush1.bf16.msra.mxu0 0
    %1515 = vmatprep.subr.bf16.mxu0 0
    %1516 = vmatpush1.bf16.msra.mxu0 0
    %1517 = vmatprep.subr.bf16.mxu0 0
    %1518 = vmatpush1.bf16.msra.mxu0 0
    %1519 = vmatprep.subr.bf16.mxu0 0
    %1520 = vmatpush1.bf16.msra.mxu0 0
    %1521 = vmatprep.subr.bf16.mxu0 0
    %1522 = vmatpush1.bf16.msra.mxu0 0
    %1523 = vmatprep.mubr.bf16.mxu0 0
    %1524 = vmatmul.mubr.bf16.gmra.mrb[0].mxu0 %v1489
    %v1525 = vpop.f32.mrb[0].mxu0
    %v1526 = vadd.f32 %v1474, %v1525
    %v1527 = vpop.f32.mrb[0].mxu0
    %v1528 = vpop.f32.mrb[0].mxu0
    %v1529 = vadd.f32 %v1474, %v1528
    %v1530 = vpop.f32.mrb[0].mxu0
    %1531 = vdwg.mxu0
    %v1532 = vld [vmem:[%s21] sm:$0x1]
    %v1534 = vlaneseq
    %v1535 = vshrl.u32 %v1534, 7
    %v1536 = vsub.s32 0, %v1535
    %v1537 = vrot.slane %v1532, %v1536
    %v1539 = vmul.f32 %v1537, %v1526
    %v1540 = vmul.f32 %v1537, %v1529
    %v1541 = vsub.f32 1.0, %v1532
    %v1543 = vlaneseq
    %v1544 = vshrl.u32 %v1543, 7
    %v1545 = vsub.s32 0, %v1544
    %v1546 = vrot.slane %v1541, %v1545
    %v1548 = vmul.f32 %v1546, %v288
    %v1549 = vmul.f32 %v1546, %v289
    %v1550 = vadd.f32 %v1539, %v1548
    %v1551 = vadd.f32 %v1540, %v1549
    %1552 = vst.msk [vmem:[#allocation2] sm:$0xff] %vm392, %v1550
    %1553 = vst.msk [vmem:[#allocation2 + $0x8] sm:$0xff] %vm392, %v1551
    %s1554 = sld [smem:[#allocation4]]
    %s1555 = scalar_lea.vmem [#allocation2], %s1554
    %v1556 = vld [vmem:[%s1555] sm:$0x1]
    %vm1557 = vcmask 253952
    %1558 = vst.msk [vmem:[#allocation3] sm:$0x1] %vm1557, %v1556
    %s1559 = sld [smem:[#allocation4 + $0x1]]
    %s1560 = scalar_lea.vmem [#allocation2], %s1559
    %v1561 = vld [vmem:[%s1560] sm:$0x1]
    %1562 = vst.msk [vmem:[#allocation3 + $0x1] sm:$0x1] %vm1557, %v1561
    %s1563 = sld [smem:[#allocation4 + $0x2]]
    %s1564 = scalar_lea.vmem [#allocation2], %s1563
    %v1565 = vld [vmem:[%s1564] sm:$0x1]
    %1566 = vst.msk [vmem:[#allocation3 + $0x2] sm:$0x1] %vm1557, %v1565
    %s1567 = sld [smem:[#allocation4 + $0x3]]
    %s1568 = scalar_lea.vmem [#allocation2], %s1567
    %v1569 = vld [vmem:[%s1568] sm:$0x1]
    %1570 = vst.msk [vmem:[#allocation3 + $0x3] sm:$0x1] %vm1557, %v1569
    %s1571 = sld [smem:[#allocation4 + $0x4]]
    %s1572 = scalar_lea.vmem [#allocation2], %s1571
    %v1573 = vld [vmem:[%s1572] sm:$0x1]
    %1574 = vst.msk [vmem:[#allocation3 + $0x4] sm:$0x1] %vm1557, %v1573
    %s1575 = sld [smem:[#allocation4 + $0x5]]
    %s1576 = scalar_lea.vmem [#allocation2], %s1575
    %v1577 = vld [vmem:[%s1576] sm:$0x1]
    %1578 = vst.msk [vmem:[#allocation3 + $0x5] sm:$0x1] %vm1557, %v1577
    %s1579 = sld [smem:[#allocation4 + $0x6]]
    %s1580 = scalar_lea.vmem [#allocation2], %s1579
    %v1581 = vld [vmem:[%s1580] sm:$0x1]
    %1582 = vst.msk [vmem:[#allocation3 + $0x6] sm:$0x1] %vm1557, %v1581
    %s1583 = sld [smem:[#allocation4 + $0x7]]
    %s1584 = scalar_lea.vmem [#allocation2], %s1583
    %v1585 = vld [vmem:[%s1584] sm:$0x1]
    %1586 = vst.msk [vmem:[#allocation3 + $0x7] sm:$0x1] %vm1557, %v1585
    %v1587 = vld [vmem:[#allocation3] sm:$0xff]
    %v1588 = vpack.c.bf16 %v1587, %v1587
    %v1589 = vld [vmem:[%s91] sm:$0xf]
    %v1590 = vld [vmem:[%s91 + $0x4] sm:$0xf]
    %v1591 = vld [vmem:[%s91 + $0x8] sm:$0xf]
    %v1592 = vld [vmem:[%s91 + $0xc] sm:$0xf]
    %v1593 = vld [vmem:[%s93] sm:$0x1]
    %v1595 = vlaneseq
    %v1596 = vshrl.u32 %v1595, 7
    %v1597 = vsub.s32 0, %v1596
    %v1598 = vrot.slane %v1593, %v1597
    %v1604 = vunpack.c.l.b16 %v1589
    %v1605 = vunpack.c.l.b16 %v1590
    %v1606 = vunpack.c.l.b16 %v1591
    %v1607 = vunpack.c.l.b16 %v1592
    %v1608 = vpack.c.b16 %v1605, %v1604
    %v1609 = vpack.c.b16 %v1607, %v1606
    %v1613 = vsel %vm392, %v1588, 0
    %1615 = vmatprep.subr.bf16.mxu0 0
    %1616 = vmatpush1.bf16.msra.mxu0 %v1608
    %1617 = vmatprep.subr.bf16.mxu0 0
    %1618 = vmatpush1.bf16.msra.mxu0 %v1609
    %1619 = vmatprep.subr.bf16.mxu0 0
    %1620 = vmatpush1.bf16.msra.mxu0 0
    %1621 = vmatprep.subr.bf16.mxu0 0
    %1622 = vmatpush1.bf16.msra.mxu0 0
    %1623 = vmatprep.subr.bf16.mxu0 0
    %1624 = vmatpush1.bf16.msra.mxu0 0
    %1625 = vmatprep.subr.bf16.mxu0 0
    %1626 = vmatpush1.bf16.msra.mxu0 0
    %1627 = vmatprep.subr.bf16.mxu0 0
    %1628 = vmatpush1.bf16.msra.mxu0 0
    %1629 = vmatprep.subr.bf16.mxu0 0
    %1630 = vmatpush1.bf16.msra.mxu0 0
    %1631 = vmatprep.subr.bf16.mxu0 0
    %1632 = vmatpush1.bf16.msra.mxu0 0
    %1633 = vmatprep.subr.bf16.mxu0 0
    %1634 = vmatpush1.bf16.msra.mxu0 0
    %1635 = vmatprep.subr.bf16.mxu0 0
    %1636 = vmatpush1.bf16.msra.mxu0 0
    %1637 = vmatprep.subr.bf16.mxu0 0
    %1638 = vmatpush1.bf16.msra.mxu0 0
    %1639 = vmatprep.subr.bf16.mxu0 0
    %1640 = vmatpush1.bf16.msra.mxu0 0
    %1641 = vmatprep.subr.bf16.mxu0 0
    %1642 = vmatpush1.bf16.msra.mxu0 0
    %1643 = vmatprep.subr.bf16.mxu0 0
    %1644 = vmatpush1.bf16.msra.mxu0 0
    %1645 = vmatprep.subr.bf16.mxu0 0
    %1646 = vmatpush1.bf16.msra.mxu0 0
    %1647 = vmatprep.mubr.bf16.mxu0 0
    %1648 = vmatmul.mubr.bf16.gmra.mrb[0].mxu0 %v1613
    %v1649 = vpop.f32.mrb[0].mxu0
    %v1650 = vadd.f32 %v1598, %v1649
    %v1651 = vpop.f32.mrb[0].mxu0
    %v1652 = vpop.f32.mrb[0].mxu0
    %v1653 = vpop.f32.mrb[0].mxu0
    %1654 = vdwg.mxu0
    %v1655 = vpack.c.bf16 %v1650, %v1650
    %v1656 = vpack.c.bf16 %v1551, %v1550
    %v1658 = vsel %vm392, %v1655, 0
    %v1661 = vsel %vm392, %v1656, 0
    %1663 = vmatprep.subr.bf16.mxu0 0
    %1664 = vmatpush1.bf16.xpose.msra.mxu0 %v1661
    %1665 = vmatprep.subr.bf16.mxu0 0
    %1666 = vmatpush1.bf16.xpose.msra.mxu0 0
    %1667 = vmatprep.subr.bf16.mxu0 0
    %1668 = vmatpush1.bf16.xpose.msra.mxu0 0
    %1669 = vmatprep.subr.bf16.mxu0 0
    %1670 = vmatpush1.bf16.xpose.msra.mxu0 0
    %1671 = vmatprep.subr.bf16.mxu0 0
    %1672 = vmatpush1.bf16.xpose.msra.mxu0 0
    %1673 = vmatprep.subr.bf16.mxu0 0
    %1674 = vmatpush1.bf16.xpose.msra.mxu0 0
    %1675 = vmatprep.subr.bf16.mxu0 0
    %1676 = vmatpush1.bf16.xpose.msra.mxu0 0
    %1677 = vmatprep.subr.bf16.mxu0 0
    %1678 = vmatpush1.bf16.xpose.msra.mxu0 0
    %1679 = vmatprep.subr.bf16.mxu0 0
    %1680 = vmatpush1.bf16.xpose.msra.mxu0 0
    %1681 = vmatprep.subr.bf16.mxu0 0
    %1682 = vmatpush1.bf16.xpose.msra.mxu0 0
    %1683 = vmatprep.subr.bf16.mxu0 0
    %1684 = vmatpush1.bf16.xpose.msra.mxu0 0
    %1685 = vmatprep.subr.bf16.mxu0 0
    %1686 = vmatpush1.bf16.xpose.msra.mxu0 0
    %1687 = vmatprep.subr.bf16.mxu0 0
    %1688 = vmatpush1.bf16.xpose.msra.mxu0 0
    %1689 = vmatprep.subr.bf16.mxu0 0
    %1690 = vmatpush1.bf16.xpose.msra.mxu0 0
    %1691 = vmatprep.subr.bf16.mxu0 0
    %1692 = vmatpush1.bf16.xpose.msra.mxu0 0
    %1693 = vmatprep.subr.bf16.mxu0 0
    %1694 = vmatpush1.bf16.xpose.msra.mxu0 0
    %1695 = vmatprep.mubr.bf16.mxu0 0
    %1696 = vmatmul.mubr.bf16.gmra.mrb[0].mxu0 %v1658
    %v1697 = vpop.f32.mrb[0].mxu0
    %v1698 = vadd.f32 0.0, %v1697
    %v1699 = vpop.f32.mrb[0].mxu0
    %v1700 = vpop.f32.mrb[0].mxu0
    %v1701 = vpop.f32.mrb[0].mxu0
    %1702 = vdwg.mxu0
    %v1703 = vxor.u32 %v1698, 2147483648
    %v1704 = vmul.f32 %v1703, 1.442695
    %v1705 = vpow.pop %v1704
    %v1706 = vadd.f32 %v1705, 1.0
    %v1707 = vrcp.pop %v1706
    %v1708 = vmul.f32 1.0, %v1707
    %1709 = vst.msk [vmem:[#allocation7] sm:$0xff] %vm312, %v1708
    // Predicated region
    $region198: #{model_forward.1} parent=1 // pred_check
      _
    $region199: #{model_forward.1} parent=1 // pred_check_branch
      %1711 = sbr.rel (0) target = $region201
    $region200: #{model_forward.1} parent=1 // pred_region
      %s1713 = ssub.s32 128, 128
      %1714 = vsyncadd [#allocation5], %s1713
      %s1716 = sshll.u32 [#allocation7], 4
      %s1717 = int_to_ptr.vmem [resolvable:$true] %s1716
      %1719 = dma.vmem_to_hbm [thread:$0]  %s1717, 128, %s97, [#allocation5]
    $region201: #{model_forward.1} parent=1 // pred_fallthru
      _
    // Predicated region
    $region202: #{model_forward.1} parent=1 // pred_check
      _
    $region203: #{model_forward.1} parent=1 // pred_check_branch
      %1721 = sbr.rel (0) target = $region205
    $region204: #{model_forward.1} parent=1 // pred_region
      %1722 = dma.done [#allocation5], 128
    $region205: #{model_forward.1} parent=1 // pred_fallthru
      _
    %1723 = vsyncpa [#allocation5], 1
    %1724 = vsyncpa [#allocation6], 1

</llo_original>
